<compile_context>
chip_gen: v5e
topology: v5e:2x2
jax: 0.10.0
libtpu: 0.0.40
codegen_flags: <defaults>
</compile_context>

<pallas_src>
import functools

import jax
import jax.numpy as jnp
from jax.experimental import pallas as pl
from jax.experimental.pallas import tpu as pltpu


def _round_up(x, m):
    return (x + m - 1) // m * m


# ----------------------------- Pallas kernel --------------------------------

def _conv_decomp_kernel(x_ref, w_ref, b_ref, o_ref, *, kh, kw, stride, oh, ow):
    """One batch element per grid step.

    x_ref: (1, HP, WP, CIN)        spatially pre-padded input slab (VMEM)
    w_ref: (KH, KW, CIN, COUT_P)   decomposed weight, channel-padded, resident
    b_ref: (1, COUT_P)             bias, channel-padded
    o_ref: (1, OH, OW, COUT_P)     output tile (lane-dense channel axis)
    """
    cin = x_ref.shape[-1]
    coutp = o_ref.shape[-1]

    xs = x_ref[0]        # (HP, WP, CIN)
    wv = w_ref[...]      # (KH, KW, CIN, COUT_P)

    # f32 accumulator; the kh*kw loop is a short static unroll feeding the MXU.
    acc = jnp.zeros((oh * ow, coutp), jnp.float32)

    # Shifted-matmul accumulation:
    #   y[p, :] = sum_{i,j} x_shift(i, j)[p, :] @ w[i, j]
    # -> no im2col buffer; x lives in VMEM once and is sliced in place.
    for i in range(kh):
        for j in range(kw):
            if stride == 1:
                patch = xs[i:i + oh, j:j + ow, :]
            else:
                patch = jax.lax.slice(
                    xs, (i, j, 0),
                    (i + (oh - 1) * stride + 1, j + (ow - 1) * stride + 1, cin),
                    (stride, stride, 1))
            acc += jnp.dot(patch.reshape(oh * ow, cin), wv[i, j],
                           preferred_element_type=jnp.float32)

    acc = acc + b_ref[...]
    o_ref[...] = acc.reshape(1, oh, ow, coutp).astype(o_ref.dtype)


# ------------------------------ host wrapper ---------------------------------

@functools.partial(jax.jit,
                   static_argnames=("stride", "padding", "compute_dtype"))
def conv2d_decomp(x, v, g, bias, stride=1, padding=0,
                  compute_dtype=jnp.float32):
    """Conv2dDecomp.forward:  w = v * g[:, :, None, None];  y = conv2d(x, w, bias).

    x: (N, Cin, H, W) f32.  Returns (N, Cout, OH, OW) f32.
    """
    n, cin, h, w_in = x.shape
    cout, _, kh, kw = v.shape
    oh = (h + 2 * padding - kh) // stride + 1
    ow = (w_in + 2 * padding - kw) // stride + 1
    coutp = max(_round_up(cout, 128), 128)   # lane-dense output channel axis

    # --- weight decomposition + channel padding (tiny glue) -------------------
    wdec = v * g[:, :, None, None]                     # (Cout, Cin, KH, KW)
    wdec = jnp.transpose(wdec, (2, 3, 1, 0))           # (KH, KW, Cin, Cout)
    wdec = jnp.pad(wdec, ((0, 0), (0, 0), (0, 0), (0, coutp - cout)))
    b = jnp.pad(bias, (0, coutp - cout)).reshape(1, coutp).astype(jnp.float32)

    # --- input: NCHW -> NHWC + spatial zero pad (layout glue, x read once) ----
    xh = jnp.transpose(x, (0, 2, 3, 1))
    xh = jnp.pad(xh, ((0, 0), (padding, padding), (padding, padding), (0, 0)))
    hp, wp = xh.shape[1], xh.shape[2]

    if compute_dtype != jnp.float32:
        xh = xh.astype(compute_dtype)
        wdec = wdec.astype(compute_dtype)

    kernel = functools.partial(_conv_decomp_kernel, kh=kh, kw=kw,
                               stride=stride, oh=oh, ow=ow)

    out = pl.pallas_call(
        kernel,
        out_shape=jax.ShapeDtypeStruct((n, oh, ow, coutp), jnp.float32),
        grid=(n,),
        in_specs=[
            pl.BlockSpec((1, hp, wp, cin), lambda i: (i, 0, 0, 0)),
            pl.BlockSpec((kh, kw, cin, coutp), lambda i: (0, 0, 0, 0)),
            pl.BlockSpec((1, coutp), lambda i: (0, 0)),
        ],
        out_specs=pl.BlockSpec((1, oh, ow, coutp), lambda i: (i, 0, 0, 0)),
        compiler_params=pltpu.CompilerParams(
            dimension_semantics=("parallel",)),
    )(xh, wdec, b)

    # Strip channel padding, back to NCHW.
    return jnp.transpose(out[..., :cout], (0, 3, 1, 2))


# -------------------------- pure-JAX reference check --------------------------

def _reference(x, v, g, bias, stride, padding):
    w = v * g[:, :, None, None]
    y = jax.lax.conv_general_dilated(
        x, w, window_strides=(stride, stride),
        padding=[(padding, padding), (padding, padding)],
        dimension_numbers=("NCHW", "OIHW", "NCHW"))
    return y + bias[None, :, None, None]


# ----------------------------------- main -------------------------------------

if __name__ == "__main__":
    N, CIN, H, W = 2, 4, 16, 16
    COUT, K = 8, 3
    STRIDE, PADDING = 1, 1

    key = jax.random.PRNGKey(0)
    kx, kg, kv = jax.random.split(key, 3)

    x = jax.random.normal(kx, (N, CIN, H, W), dtype=jnp.float32)

    # Parameter init mirroring Conv2dDecomp.__init__ (args=None):
    #   g ~ normal, row-normalized (oblique branch)
    g = jax.random.normal(kg, (COUT, CIN), dtype=jnp.float32)
    g = g / jnp.linalg.norm(g, axis=1, keepdims=True)
    #   v ~ normal, normalized per (out, in) spatial filter (decomp_type='norm')
    v = jax.random.normal(kv, (COUT, CIN, K, K), dtype=jnp.float32)
    v = v / jnp.sqrt(jnp.sum(v * v, axis=(2, 3), keepdims=True))
    #   conv bias initialized to 0
    bias = jnp.zeros((COUT,), dtype=jnp.float32)

    out = conv2d_decomp(x, v, g, bias, stride=STRIDE, padding=PADDING)
    out = jax.block_until_ready(out)

    ref = _reference(x, v, g, bias, STRIDE, PADDING)
    assert out.shape == (N, COUT, H, W), out.shape
    err = float(jnp.max(jnp.abs(out - ref)))
    assert err < 1e-3, err

    print("KERNEL_OK")
</pallas_src>

<mosaic_0001>
module attributes {stable_mosaic.version = 11 : i64} {
  func.func @_conv_decomp_kernel(%arg0: i32, %arg1: memref<1x18x18x4xf32, #tpu.memory_space<vmem>>, %arg2: memref<3x3x4x128xf32, #tpu.memory_space<vmem>>, %arg3: memref<1x128xf32, #tpu.memory_space<vmem>>, %arg4: memref<1x16x16x128xf32, #tpu.memory_space<vmem>>) attributes {dimension_semantics = [#tpu.dimension_semantics<parallel>], iteration_bounds = array<i64: 2>, scalar_prefetch = 0 : i64, scratch_operands = 0 : i64, tpu.core_type = #tpu.core_type<tc>, window_params = [{transform_indices = @transform_0, window_bounds = array<i64: 1, 18, 18, 4>}, {pipeline_mode = #tpu.pipeline_mode<synchronous>, transform_indices = @transform_1, window_bounds = array<i64: 3, 3, 4, 128>}, {pipeline_mode = #tpu.pipeline_mode<synchronous>, transform_indices = @transform_2, window_bounds = array<i64: 1, 128>}, {transform_indices = @transform_3, window_bounds = array<i64: 1, 16, 16, 128>}]} {
    %c0 = arith.constant 0 : index
    %c0_0 = arith.constant 0 : index
    %c0_1 = arith.constant 0 : index
    %c0_2 = arith.constant 0 : index
    %0 = vector.load %arg1[%c0, %c0_0, %c0_1, %c0_2] : memref<1x18x18x4xf32, #tpu.memory_space<vmem>>, vector<1x18x18x4xf32>
    %1 = vector.shape_cast %0 : vector<1x18x18x4xf32> to vector<18x18x4xf32>
    %c0_3 = arith.constant 0 : index
    %c0_4 = arith.constant 0 : index
    %c0_5 = arith.constant 0 : index
    %c0_6 = arith.constant 0 : index
    %2 = vector.load %arg2[%c0_3, %c0_4, %c0_5, %c0_6] : memref<3x3x4x128xf32, #tpu.memory_space<vmem>>, vector<3x3x4x128xf32>
    %cst = arith.constant 0.000000e+00 : f32
    %3 = vector.broadcast %cst : f32 to vector<256x128xf32>
    %4 = vector.extract_strided_slice %1 {offsets = [0, 0, 0], sizes = [16, 16, 4], strides = [1, 1, 1]} : vector<18x18x4xf32> to vector<16x16x4xf32>
    %5 = vector.shape_cast %4 : vector<16x16x4xf32> to vector<256x4xf32>
    %6 = vector.extract_strided_slice %2 {offsets = [0, 0, 0, 0], sizes = [1, 1, 4, 128], strides = [1, 1, 1, 1]} : vector<3x3x4x128xf32> to vector<1x1x4x128xf32>
    %7 = vector.shape_cast %6 : vector<1x1x4x128xf32> to vector<4x128xf32>
    %cst_7 = arith.constant dense<0.000000e+00> : vector<256x128xf32>
    %8 = tpu.matmul %5, %7, %cst_7 {dimension_numbers = #tpu.dot_dimension_numbers<[1], [0], [0], [1], [0, 0, 1, 1], [], []>} : vector<256x4xf32>, vector<4x128xf32>, vector<256x128xf32> -> vector<256x128xf32>
    %9 = arith.addf %3, %8 : vector<256x128xf32>
    %10 = vector.extract_strided_slice %1 {offsets = [0, 1, 0], sizes = [16, 16, 4], strides = [1, 1, 1]} : vector<18x18x4xf32> to vector<16x16x4xf32>
    %11 = vector.shape_cast %10 : vector<16x16x4xf32> to vector<256x4xf32>
    %12 = vector.extract_strided_slice %2 {offsets = [0, 1, 0, 0], sizes = [1, 1, 4, 128], strides = [1, 1, 1, 1]} : vector<3x3x4x128xf32> to vector<1x1x4x128xf32>
    %13 = vector.shape_cast %12 : vector<1x1x4x128xf32> to vector<4x128xf32>
    %cst_8 = arith.constant dense<0.000000e+00> : vector<256x128xf32>
    %14 = tpu.matmul %11, %13, %cst_8 {dimension_numbers = #tpu.dot_dimension_numbers<[1], [0], [0], [1], [0, 0, 1, 1], [], []>} : vector<256x4xf32>, vector<4x128xf32>, vector<256x128xf32> -> vector<256x128xf32>
    %15 = arith.addf %9, %14 : vector<256x128xf32>
    %16 = vector.extract_strided_slice %1 {offsets = [0, 2, 0], sizes = [16, 16, 4], strides = [1, 1, 1]} : vector<18x18x4xf32> to vector<16x16x4xf32>
    %17 = vector.shape_cast %16 : vector<16x16x4xf32> to vector<256x4xf32>
    %18 = vector.extract_strided_slice %2 {offsets = [0, 2, 0, 0], sizes = [1, 1, 4, 128], strides = [1, 1, 1, 1]} : vector<3x3x4x128xf32> to vector<1x1x4x128xf32>
    %19 = vector.shape_cast %18 : vector<1x1x4x128xf32> to vector<4x128xf32>
    %cst_9 = arith.constant dense<0.000000e+00> : vector<256x128xf32>
    %20 = tpu.matmul %17, %19, %cst_9 {dimension_numbers = #tpu.dot_dimension_numbers<[1], [0], [0], [1], [0, 0, 1, 1], [], []>} : vector<256x4xf32>, vector<4x128xf32>, vector<256x128xf32> -> vector<256x128xf32>
    %21 = arith.addf %15, %20 : vector<256x128xf32>
    %22 = vector.extract_strided_slice %1 {offsets = [1, 0, 0], sizes = [16, 16, 4], strides = [1, 1, 1]} : vector<18x18x4xf32> to vector<16x16x4xf32>
    %23 = vector.shape_cast %22 : vector<16x16x4xf32> to vector<256x4xf32>
    %24 = vector.extract_strided_slice %2 {offsets = [1, 0, 0, 0], sizes = [1, 1, 4, 128], strides = [1, 1, 1, 1]} : vector<3x3x4x128xf32> to vector<1x1x4x128xf32>
    %25 = vector.shape_cast %24 : vector<1x1x4x128xf32> to vector<4x128xf32>
    %cst_10 = arith.constant dense<0.000000e+00> : vector<256x128xf32>
    %26 = tpu.matmul %23, %25, %cst_10 {dimension_numbers = #tpu.dot_dimension_numbers<[1], [0], [0], [1], [0, 0, 1, 1], [], []>} : vector<256x4xf32>, vector<4x128xf32>, vector<256x128xf32> -> vector<256x128xf32>
    %27 = arith.addf %21, %26 : vector<256x128xf32>
    %28 = vector.extract_strided_slice %1 {offsets = [1, 1, 0], sizes = [16, 16, 4], strides = [1, 1, 1]} : vector<18x18x4xf32> to vector<16x16x4xf32>
    %29 = vector.shape_cast %28 : vector<16x16x4xf32> to vector<256x4xf32>
    %30 = vector.extract_strided_slice %2 {offsets = [1, 1, 0, 0], sizes = [1, 1, 4, 128], strides = [1, 1, 1, 1]} : vector<3x3x4x128xf32> to vector<1x1x4x128xf32>
    %31 = vector.shape_cast %30 : vector<1x1x4x128xf32> to vector<4x128xf32>
    %cst_11 = arith.constant dense<0.000000e+00> : vector<256x128xf32>
    %32 = tpu.matmul %29, %31, %cst_11 {dimension_numbers = #tpu.dot_dimension_numbers<[1], [0], [0], [1], [0, 0, 1, 1], [], []>} : vector<256x4xf32>, vector<4x128xf32>, vector<256x128xf32> -> vector<256x128xf32>
    %33 = arith.addf %27, %32 : vector<256x128xf32>
    %34 = vector.extract_strided_slice %1 {offsets = [1, 2, 0], sizes = [16, 16, 4], strides = [1, 1, 1]} : vector<18x18x4xf32> to vector<16x16x4xf32>
    %35 = vector.shape_cast %34 : vector<16x16x4xf32> to vector<256x4xf32>
    %36 = vector.extract_strided_slice %2 {offsets = [1, 2, 0, 0], sizes = [1, 1, 4, 128], strides = [1, 1, 1, 1]} : vector<3x3x4x128xf32> to vector<1x1x4x128xf32>
    %37 = vector.shape_cast %36 : vector<1x1x4x128xf32> to vector<4x128xf32>
    %cst_12 = arith.constant dense<0.000000e+00> : vector<256x128xf32>
    %38 = tpu.matmul %35, %37, %cst_12 {dimension_numbers = #tpu.dot_dimension_numbers<[1], [0], [0], [1], [0, 0, 1, 1], [], []>} : vector<256x4xf32>, vector<4x128xf32>, vector<256x128xf32> -> vector<256x128xf32>
    %39 = arith.addf %33, %38 : vector<256x128xf32>
    %40 = vector.extract_strided_slice %1 {offsets = [2, 0, 0], sizes = [16, 16, 4], strides = [1, 1, 1]} : vector<18x18x4xf32> to vector<16x16x4xf32>
    %41 = vector.shape_cast %40 : vector<16x16x4xf32> to vector<256x4xf32>
    %42 = vector.extract_strided_slice %2 {offsets = [2, 0, 0, 0], sizes = [1, 1, 4, 128], strides = [1, 1, 1, 1]} : vector<3x3x4x128xf32> to vector<1x1x4x128xf32>
    %43 = vector.shape_cast %42 : vector<1x1x4x128xf32> to vector<4x128xf32>
    %cst_13 = arith.constant dense<0.000000e+00> : vector<256x128xf32>
    %44 = tpu.matmul %41, %43, %cst_13 {dimension_numbers = #tpu.dot_dimension_numbers<[1], [0], [0], [1], [0, 0, 1, 1], [], []>} : vector<256x4xf32>, vector<4x128xf32>, vector<256x128xf32> -> vector<256x128xf32>
    %45 = arith.addf %39, %44 : vector<256x128xf32>
    %46 = vector.extract_strided_slice %1 {offsets = [2, 1, 0], sizes = [16, 16, 4], strides = [1, 1, 1]} : vector<18x18x4xf32> to vector<16x16x4xf32>
    %47 = vector.shape_cast %46 : vector<16x16x4xf32> to vector<256x4xf32>
    %48 = vector.extract_strided_slice %2 {offsets = [2, 1, 0, 0], sizes = [1, 1, 4, 128], strides = [1, 1, 1, 1]} : vector<3x3x4x128xf32> to vector<1x1x4x128xf32>
    %49 = vector.shape_cast %48 : vector<1x1x4x128xf32> to vector<4x128xf32>
    %cst_14 = arith.constant dense<0.000000e+00> : vector<256x128xf32>
    %50 = tpu.matmul %47, %49, %cst_14 {dimension_numbers = #tpu.dot_dimension_numbers<[1], [0], [0], [1], [0, 0, 1, 1], [], []>} : vector<256x4xf32>, vector<4x128xf32>, vector<256x128xf32> -> vector<256x128xf32>
    %51 = arith.addf %45, %50 : vector<256x128xf32>
    %52 = vector.extract_strided_slice %1 {offsets = [2, 2, 0], sizes = [16, 16, 4], strides = [1, 1, 1]} : vector<18x18x4xf32> to vector<16x16x4xf32>
    %53 = vector.shape_cast %52 : vector<16x16x4xf32> to vector<256x4xf32>
    %54 = vector.extract_strided_slice %2 {offsets = [2, 2, 0, 0], sizes = [1, 1, 4, 128], strides = [1, 1, 1, 1]} : vector<3x3x4x128xf32> to vector<1x1x4x128xf32>
    %55 = vector.shape_cast %54 : vector<1x1x4x128xf32> to vector<4x128xf32>
    %cst_15 = arith.constant dense<0.000000e+00> : vector<256x128xf32>
    %56 = tpu.matmul %53, %55, %cst_15 {dimension_numbers = #tpu.dot_dimension_numbers<[1], [0], [0], [1], [0, 0, 1, 1], [], []>} : vector<256x4xf32>, vector<4x128xf32>, vector<256x128xf32> -> vector<256x128xf32>
    %57 = arith.addf %51, %56 : vector<256x128xf32>
    %c0_16 = arith.constant 0 : index
    %c0_17 = arith.constant 0 : index
    %58 = vector.load %arg3[%c0_16, %c0_17] : memref<1x128xf32, #tpu.memory_space<vmem>>, vector<1x128xf32>
    %59 = vector.broadcast %58 : vector<1x128xf32> to vector<256x128xf32>
    %60 = arith.addf %57, %59 : vector<256x128xf32>
    %61 = vector.shape_cast %60 : vector<256x128xf32> to vector<1x16x16x128xf32>
    %c0_18 = arith.constant 0 : index
    %c0_19 = arith.constant 0 : index
    %c0_20 = arith.constant 0 : index
    %c0_21 = arith.constant 0 : index
    %62 = vector.load %arg4[%c0_18, %c0_19, %c0_20, %c0_21] : memref<1x16x16x128xf32, #tpu.memory_space<vmem>>, vector<1x16x16x128xf32>
    tpu.vector_store %arg4[%c0_18, %c0_19, %c0_20, %c0_21], %61 {strides = array<i32>} : memref<1x16x16x128xf32, #tpu.memory_space<vmem>>, vector<1x16x16x128xf32>,
    return
  }
  func.func @transform_0(%arg0: i32) -> (i32, i32, i32, i32) {
    %c0_i32 = arith.constant 0 : i32
    %c0_i32_0 = arith.constant 0 : i32
    %c0_i32_1 = arith.constant 0 : i32
    %c0_i32_2 = arith.constant 0 : i32
    return %arg0, %c0_i32, %c0_i32_0, %c0_i32_1 : i32, i32, i32, i32
  }
  func.func @transform_1(%arg0: i32) -> (i32, i32, i32, i32) {
    %c0_i32 = arith.constant 0 : i32
    %c0_i32_0 = arith.constant 0 : i32
    %c0_i32_1 = arith.constant 0 : i32
    %c0_i32_2 = arith.constant 0 : i32
    %c0_i32_3 = arith.constant 0 : i32
    return %c0_i32, %c0_i32_0, %c0_i32_1, %c0_i32_2 : i32, i32, i32, i32
  }
  func.func @transform_2(%arg0: i32) -> (i32, i32) {
    %c0_i32 = arith.constant 0 : i32
    %c0_i32_0 = arith.constant 0 : i32
    %c0_i32_1 = arith.constant 0 : i32
    return %c0_i32, %c0_i32_0 : i32, i32
  }
  func.func @transform_3(%arg0: i32) -> (i32, i32, i32, i32) {
    %c0_i32 = arith.constant 0 : i32
    %c0_i32_0 = arith.constant 0 : i32
    %c0_i32_1 = arith.constant 0 : i32
    %c0_i32_2 = arith.constant 0 : i32
    return %arg0, %c0_i32, %c0_i32_0, %c0_i32_1 : i32, i32, i32, i32
  }
}

</mosaic_0001>

<llo_original>
// kernel: conv2d_decomp.1
$region0: #{conv2d_decomp.1}
  #allocation0 [shape = 'u32[]', space=smem, size = 0x4, offset = 0x4, fixed_abs, tag = 'smem constant byte address 0x4 - core index']
  #allocation1 [shape = 'u32[72,128]{1,0:T(1,128)}', space=vmem, size = 0x9000, scoped, tag = 'internal scratch']
  %s0 = inlined_call_operand.vmem [shape: f32[2,18,18,4], index: 0, kind: input, shape index: {}]
  %s1 = inlined_call_operand.vmem [shape: f32[3,3,4,128], index: 1, kind: input, shape index: {}]
  %s2 = inlined_call_operand.vmem [shape: f32[1,128], index: 2, kind: input, shape index: {}]
  %s3 = inlined_call_operand.vmem [shape: f32[2,16,16,128], index: 3, kind: output, shape index: {}]
  %s4 = sld [smem:[#allocation0]]
  $region45: #{conv2d_decomp.1} parent=0
    _
  %s6 = ssub.s32 1, %s4
  %s7 = scalar_select 0, %s6, %s4
  loop: start=0, step=1, limit=4
  $region2: #{conv2d_decomp.1} parent=0 // loop_pre_header
    _
  $region3: #{conv2d_decomp.1} parent=0 // loop_header
    %s9 = sphi 0, %s13
    %p10 = scmp.ge.s32.totalorder %s9, 4
    %s19 = sphi 0, %s21
    %s22 = sphi 0, %s19
    %s23 = sphi 0, %s22
    %s39 = sphi 0, %s23
    %s43 = sphi 0, %s43
    %s45 = sphi 0, %s43
    %s46 = sphi 0, %s45
    %s60 = sphi 0, %s46
    %s64 = sphi 0, %s64
    %s66 = sphi 0, %s64
    %s67 = sphi 0, %s66
    %s81 = sphi 0, %s67
    %s87 = sphi 0, %s89
    %s90 = sphi 0, %s87
    %s91 = sphi 0, %s90
    %s107 = sphi 0, %s91
  $region4: #{conv2d_decomp.1} parent=0 // loop_header_branch
    %12 = sbr.rel (%p10) target = $region8
  $region5: #{conv2d_decomp.1} parent=0 // loop_body
    %s14 = ssub.s32 %s9, 1
    %s15 = ssub.s32 %s9, 2
    %s16 = sadd.s32 %s9, 1
    %s17 = ssub.s32 %s9, %s16
    %p18 = scmp.eq.s32.totalorder %s17, 0
    %s20 = sadd.s32 %s19, 1
    %s21 = scalar_select %p18, %s19, %s20
    %p24 = pneg %p18
    %p25 = scmp.eq.s32.totalorder %s9, 1
    %p26 = por %p24, %p25
    %p27 = scmp.ne.s32.totalorder %s19, %s22
    %p28 = scmp.eq.s32.totalorder %s9, 0
    %p29 = por %p27, %p28
    %p30 = scmp.ne.s32.totalorder %s19, %s22
    %p31 = scmp.eq.s32.totalorder %s14, 1
    %p32 = por %p30, %p31
    %p33 = scmp.ne.s32.totalorder %s22, %s23
    %p34 = scmp.eq.s32.totalorder %s14, 0
    %p35 = por %p33, %p34
    %p36 = scmp.ne.s32.totalorder %s22, %s23
    %p37 = scmp.eq.s32.totalorder %s15, 1
    %p38 = por %p36, %p37
    %p40 = scmp.ne.s32.totalorder %s23, %s39
    %p41 = scmp.eq.s32.totalorder %s15, 0
    %p42 = por %p40, %p41
    %s44 = sadd.s32 %s43, 1
    %p47 = scmp.eq.s32.totalorder %s9, 1
    %p48 = scmp.ne.s32.totalorder %s43, %s45
    %p49 = scmp.eq.s32.totalorder %s9, 0
    %p50 = por %p48, %p49
    %p51 = scmp.ne.s32.totalorder %s43, %s45
    %p52 = scmp.eq.s32.totalorder %s14, 1
    %p53 = por %p51, %p52
    %p54 = scmp.ne.s32.totalorder %s45, %s46
    %p55 = scmp.eq.s32.totalorder %s14, 0
    %p56 = por %p54, %p55
    %p57 = scmp.ne.s32.totalorder %s45, %s46
    %p58 = scmp.eq.s32.totalorder %s15, 1
    %p59 = por %p57, %p58
    %p61 = scmp.ne.s32.totalorder %s46, %s60
    %p62 = scmp.eq.s32.totalorder %s15, 0
    %p63 = por %p61, %p62
    %s65 = sadd.s32 %s64, 1
    %p68 = scmp.eq.s32.totalorder %s9, 1
    %p69 = scmp.ne.s32.totalorder %s64, %s66
    %p70 = scmp.eq.s32.totalorder %s9, 0
    %p71 = por %p69, %p70
    %p72 = scmp.ne.s32.totalorder %s64, %s66
    %p73 = scmp.eq.s32.totalorder %s14, 1
    %p74 = por %p72, %p73
    %p75 = scmp.ne.s32.totalorder %s66, %s67
    %p76 = scmp.eq.s32.totalorder %s14, 0
    %p77 = por %p75, %p76
    %p78 = scmp.ne.s32.totalorder %s66, %s67
    %p79 = scmp.eq.s32.totalorder %s15, 1
    %p80 = por %p78, %p79
    %p82 = scmp.ne.s32.totalorder %s67, %s81
    %p83 = scmp.eq.s32.totalorder %s15, 0
    %p84 = por %p82, %p83
    %s85 = ssub.s32 %s9, %s16
    %p86 = scmp.eq.s32.totalorder %s85, 0
    %s88 = sadd.s32 %s87, 1
    %s89 = scalar_select %p86, %s87, %s88
    %p92 = pneg %p86
    %p93 = scmp.eq.s32.totalorder %s9, 1
    %p94 = por %p92, %p93
    %p95 = scmp.ne.s32.totalorder %s87, %s90
    %p96 = scmp.eq.s32.totalorder %s9, 0
    %p97 = por %p95, %p96
    %p98 = scmp.ne.s32.totalorder %s87, %s90
    %p99 = scmp.eq.s32.totalorder %s14, 1
    %p100 = por %p98, %p99
    %p101 = scmp.ne.s32.totalorder %s90, %s91
    %p102 = scmp.eq.s32.totalorder %s14, 0
    %p103 = por %p101, %p102
    %p104 = scmp.ne.s32.totalorder %s90, %s91
    %p105 = scmp.eq.s32.totalorder %s15, 1
    %p106 = por %p104, %p105
    %p108 = scmp.ne.s32.totalorder %s91, %s107
    %p109 = scmp.eq.s32.totalorder %s15, 0
    %p110 = por %p108, %p109
    %p111 = scmp.le.s32.totalorder 1, %s9
    %p112 = scmp.lt.s32.totalorder %s9, 3
    %p113 = pnand %p111, %p112
    %p114 = pneg %p113
    // Predicated region
    $region9: #{conv2d_decomp.1} parent=5 // pred_check
      _
    $region10: #{conv2d_decomp.1} parent=5 // pred_check_branch
      %116 = sbr.rel (%p113) target = $region12
    $region11: #{conv2d_decomp.1} parent=5 // pred_region
      %s117 = ssub.s32 %s9, 1
      // Predicated region
      $region13: #{conv2d_decomp.1} parent=11 // pred_check
        %p118 = pneg %p56
      $region14: #{conv2d_decomp.1} parent=11 // pred_check_branch
        %120 = sbr.rel (%p118) target = $region16
      $region15: #{conv2d_decomp.1} parent=11 // pred_region
        _
      $region16: #{conv2d_decomp.1} parent=11 // pred_fallthru
        _
      // Predicated region
      $region17: #{conv2d_decomp.1} parent=11 // pred_check
        %p121 = pneg %p77
      $region18: #{conv2d_decomp.1} parent=11 // pred_check_branch
        %123 = sbr.rel (%p121) target = $region20
      $region19: #{conv2d_decomp.1} parent=11 // pred_region
        _
      $region20: #{conv2d_decomp.1} parent=11 // pred_fallthru
        _
    $region12: #{conv2d_decomp.1} parent=5 // pred_fallthru
      _
    %p124 = scmp.lt.s32.totalorder %s9, 2
    // Predicated region
    $region21: #{conv2d_decomp.1} parent=5 // pred_check
      %p125 = pneg %p124
    $region22: #{conv2d_decomp.1} parent=5 // pred_check_branch
      %127 = sbr.rel (%p125) target = $region24
    $region23: #{conv2d_decomp.1} parent=5 // pred_region
      // Predicated region
      $region25: #{conv2d_decomp.1} parent=23 // pred_check
        %p128 = pneg %p29
      $region26: #{conv2d_decomp.1} parent=23 // pred_check_branch
        %130 = sbr.rel (%p128) target = $region28
      $region27: #{conv2d_decomp.1} parent=23 // pred_region
        %p131 = scmp.lt.s32.totalorder %s9, 1
        %s132 = scalar_select %p131, %s9, 1
        %s133 = smul.addr %s132, 54
        %s134 = smul.addr %s133, 8
        %s135 = scalar_lea.vmem %s0, %s134
      $region28: #{conv2d_decomp.1} parent=23 // pred_fallthru
        _
    $region24: #{conv2d_decomp.1} parent=5 // pred_fallthru
      _
    %p136 = scmp.le.s32.totalorder 1, %s9
    %p137 = scmp.lt.s32.totalorder %s9, 3
    %p138 = pnand %p136, %p137
    %p139 = pneg %p138
    // Predicated region
    $region29: #{conv2d_decomp.1} parent=5 // pred_check
      _
    $region30: #{conv2d_decomp.1} parent=5 // pred_check_branch
      %141 = sbr.rel (%p138) target = $region32
    $region31: #{conv2d_decomp.1} parent=5 // pred_region
      %s142 = ssub.s32 %s9, 1
      %p143 = scmp.lt.s32.totalorder %s14, 1
      %s144 = scalar_select %p143, %s14, 1
      %s145 = smul.addr %s144, 54
      %s146 = smul.addr %s145, 8
      %s147 = scalar_lea.vmem %s0, %s146
      %p148 = pneg %p35
      %p149 = pneg %p32
      %p150 = pneg %p56
      %p151 = pneg %p53
      %p152 = pneg %p77
      %p153 = pneg %p74
      %p154 = pneg %p103
      %p155 = pneg %p100
      %p156 = scmp.lt.s32.totalorder %s14, 1
      %s157 = scalar_select %p156, %s14, 1
      %s158 = smul.addr %s157, 32
      %s159 = smul.addr %s158, 8
      %s160 = scalar_lea.vmem %s3, %s159
      %p161 = scmp.lt.s32.totalorder %s14, 1
      %s162 = scalar_select %p161, %s14, 1
      %s163 = smul.addr %s162, 54
      %s164 = smul.addr %s163, 8
      %s165 = scalar_lea.vmem %s0, %s164
      %p166 = scmp.lt.s32.totalorder %s14, 1
      %s167 = scalar_select %p166, %s14, 1
      %s168 = smul.addr %s167, 32
      %s169 = smul.addr %s168, 8
      %s170 = scalar_lea.vmem %s3, %s169
      %v171 = vld [vmem:[%s165] sm:$0xff]
      %v172 = vld [vmem:[%s165 + $0x8] sm:$0xff]
      %v173 = vld [vmem:[%s165 + $0x10] sm:$0x3]
      %v174 = vld [vmem:[%s165 + $0x18] sm:$0xff]
      %v175 = vld [vmem:[%s165 + $0x20] sm:$0xff]
      %v176 = vld [vmem:[%s165 + $0x28] sm:$0x3]
      %v177 = vld [vmem:[%s165 + $0x30] sm:$0xff]
      %v178 = vld [vmem:[%s165 + $0x38] sm:$0xff]
      %v179 = vld [vmem:[%s165 + $0x40] sm:$0x3]
      %v180 = vld [vmem:[%s165 + $0x48] sm:$0xff]
      %v181 = vld [vmem:[%s165 + $0x50] sm:$0xff]
      %v182 = vld [vmem:[%s165 + $0x58] sm:$0x3]
      %v183 = vld [vmem:[%s165 + $0x60] sm:$0xff]
      %v184 = vld [vmem:[%s165 + $0x68] sm:$0xff]
      %v185 = vld [vmem:[%s165 + $0x70] sm:$0x3]
      %v186 = vld [vmem:[%s165 + $0x78] sm:$0xff]
      %v187 = vld [vmem:[%s165 + $0x80] sm:$0xff]
      %v188 = vld [vmem:[%s165 + $0x88] sm:$0x3]
      %v189 = vld [vmem:[%s165 + $0x90] sm:$0xff]
      %v190 = vld [vmem:[%s165 + $0x98] sm:$0xff]
      %v191 = vld [vmem:[%s165 + $0xa0] sm:$0x3]
      %v192 = vld [vmem:[%s165 + $0xa8] sm:$0xff]
      %v193 = vld [vmem:[%s165 + $0xb0] sm:$0xff]
      %v194 = vld [vmem:[%s165 + $0xb8] sm:$0x3]
      %v195 = vld [vmem:[%s165 + $0xc0] sm:$0xff]
      %v196 = vld [vmem:[%s165 + $0xc8] sm:$0xff]
      %v197 = vld [vmem:[%s165 + $0xd0] sm:$0x3]
      %v198 = vld [vmem:[%s165 + $0xd8] sm:$0xff]
      %v199 = vld [vmem:[%s165 + $0xe0] sm:$0xff]
      %v200 = vld [vmem:[%s165 + $0xe8] sm:$0x3]
      %v201 = vld [vmem:[%s165 + $0xf0] sm:$0xff]
      %v202 = vld [vmem:[%s165 + $0xf8] sm:$0xff]
      %v203 = vld [vmem:[%s165 + $0x100] sm:$0x3]
      %v204 = vld [vmem:[%s165 + $0x108] sm:$0xff]
      %v205 = vld [vmem:[%s165 + $0x110] sm:$0xff]
      %v206 = vld [vmem:[%s165 + $0x118] sm:$0x3]
      %v207 = vld [vmem:[%s165 + $0x120] sm:$0xff]
      %v208 = vld [vmem:[%s165 + $0x128] sm:$0xff]
      %v209 = vld [vmem:[%s165 + $0x130] sm:$0x3]
      %v210 = vld [vmem:[%s165 + $0x138] sm:$0xff]
      %v211 = vld [vmem:[%s165 + $0x140] sm:$0xff]
      %v212 = vld [vmem:[%s165 + $0x148] sm:$0x3]
      %v213 = vld [vmem:[%s165 + $0x150] sm:$0xff]
      %v214 = vld [vmem:[%s165 + $0x158] sm:$0xff]
      %v215 = vld [vmem:[%s165 + $0x160] sm:$0x3]
      %v216 = vld [vmem:[%s165 + $0x168] sm:$0xff]
      %v217 = vld [vmem:[%s165 + $0x170] sm:$0xff]
      %v218 = vld [vmem:[%s165 + $0x178] sm:$0x3]
      %v219 = vld [vmem:[%s165 + $0x180] sm:$0xff]
      %v220 = vld [vmem:[%s165 + $0x188] sm:$0xff]
      %v221 = vld [vmem:[%s165 + $0x190] sm:$0x3]
      %v222 = vld [vmem:[%s165 + $0x198] sm:$0xff]
      %v223 = vld [vmem:[%s165 + $0x1a0] sm:$0xff]
      %v224 = vld [vmem:[%s165 + $0x1a8] sm:$0x3]
      %v225 = vld [vmem:[%s1] sm:$0xf]
      %v226 = vld [vmem:[%s1 + $0x4] sm:$0xf]
      %v227 = vld [vmem:[%s1 + $0x8] sm:$0xf]
      %v228 = vld [vmem:[%s1 + $0xc] sm:$0xf]
      %v229 = vld [vmem:[%s1 + $0x10] sm:$0xf]
      %v230 = vld [vmem:[%s1 + $0x14] sm:$0xf]
      %v231 = vld [vmem:[%s1 + $0x18] sm:$0xf]
      %v232 = vld [vmem:[%s1 + $0x1c] sm:$0xf]
      %v233 = vld [vmem:[%s1 + $0x20] sm:$0xf]
      %vm282 = vcmask 1046528
      %v283 = vrot.slane %v171, 1
      %v284 = vrot.slane %v172, 1
      %v285 = vsel %vm282, %v283, %v284
      %v286 = vrot.slane %v173, 1
      %v287 = vsel %vm282, %v284, %v286
      %v288 = vrot.slane %v174, 1
      %v289 = vrot.slane %v175, 1
      %v290 = vsel %vm282, %v288, %v289
      %v291 = vrot.slane %v176, 1
      %v292 = vsel %vm282, %v289, %v291
      %v293 = vrot.slane %v177, 1
      %v294 = vrot.slane %v178, 1
      %v295 = vsel %vm282, %v293, %v294
      %v296 = vrot.slane %v179, 1
      %v297 = vsel %vm282, %v294, %v296
      %v298 = vrot.slane %v180, 1
      %v299 = vrot.slane %v181, 1
      %v300 = vsel %vm282, %v298, %v299
      %v301 = vrot.slane %v182, 1
      %v302 = vsel %vm282, %v299, %v301
      %v303 = vrot.slane %v183, 1
      %v304 = vrot.slane %v184, 1
      %v305 = vsel %vm282, %v303, %v304
      %v306 = vrot.slane %v185, 1
      %v307 = vsel %vm282, %v304, %v306
      %v308 = vrot.slane %v186, 1
      %v309 = vrot.slane %v187, 1
      %v310 = vsel %vm282, %v308, %v309
      %v311 = vrot.slane %v188, 1
      %v312 = vsel %vm282, %v309, %v311
      %v313 = vrot.slane %v189, 1
      %v314 = vrot.slane %v190, 1
      %v315 = vsel %vm282, %v313, %v314
      %v316 = vrot.slane %v191, 1
      %v317 = vsel %vm282, %v314, %v316
      %v318 = vrot.slane %v192, 1
      %v319 = vrot.slane %v193, 1
      %v320 = vsel %vm282, %v318, %v319
      %v321 = vrot.slane %v194, 1
      %v322 = vsel %vm282, %v319, %v321
      %v323 = vrot.slane %v195, 1
      %v324 = vrot.slane %v196, 1
      %v325 = vsel %vm282, %v323, %v324
      %v326 = vrot.slane %v197, 1
      %v327 = vsel %vm282, %v324, %v326
      %v328 = vrot.slane %v198, 1
      %v329 = vrot.slane %v199, 1
      %v330 = vsel %vm282, %v328, %v329
      %v331 = vrot.slane %v200, 1
      %v332 = vsel %vm282, %v329, %v331
      %v333 = vrot.slane %v201, 1
      %v334 = vrot.slane %v202, 1
      %v335 = vsel %vm282, %v333, %v334
      %v336 = vrot.slane %v203, 1
      %v337 = vsel %vm282, %v334, %v336
      %v338 = vrot.slane %v204, 1
      %v339 = vrot.slane %v205, 1
      %v340 = vsel %vm282, %v338, %v339
      %v341 = vrot.slane %v206, 1
      %v342 = vsel %vm282, %v339, %v341
      %v343 = vrot.slane %v207, 1
      %v344 = vrot.slane %v208, 1
      %v345 = vsel %vm282, %v343, %v344
      %v346 = vrot.slane %v209, 1
      %v347 = vsel %vm282, %v344, %v346
      %v348 = vrot.slane %v210, 1
      %v349 = vrot.slane %v211, 1
      %v350 = vsel %vm282, %v348, %v349
      %v351 = vrot.slane %v212, 1
      %v352 = vsel %vm282, %v349, %v351
      %v353 = vrot.slane %v213, 1
      %v354 = vrot.slane %v214, 1
      %v355 = vsel %vm282, %v353, %v354
      %v356 = vrot.slane %v215, 1
      %v357 = vsel %vm282, %v354, %v356
      %v358 = vrot.slane %v216, 1
      %v359 = vrot.slane %v217, 1
      %v360 = vsel %vm282, %v358, %v359
      %v361 = vrot.slane %v218, 1
      %v362 = vsel %vm282, %v359, %v361
      %vm363 = vcmask 31744
      %v364 = vsel %vm363, %v285, 0
      %v366 = vsel %vm363, %v287, 0
      %v368 = vsel %vm363, %v290, 0
      %v370 = vsel %vm363, %v292, 0
      %v372 = vsel %vm363, %v295, 0
      %v374 = vsel %vm363, %v297, 0
      %v376 = vsel %vm363, %v300, 0
      %v378 = vsel %vm363, %v302, 0
      %v380 = vsel %vm363, %v305, 0
      %v382 = vsel %vm363, %v307, 0
      %v384 = vsel %vm363, %v310, 0
      %v386 = vsel %vm363, %v312, 0
      %v388 = vsel %vm363, %v315, 0
      %v390 = vsel %vm363, %v317, 0
      %v392 = vsel %vm363, %v320, 0
      %v394 = vsel %vm363, %v322, 0
      %v396 = vsel %vm363, %v325, 0
      %v398 = vsel %vm363, %v327, 0
      %v400 = vsel %vm363, %v330, 0
      %v402 = vsel %vm363, %v332, 0
      %v404 = vsel %vm363, %v335, 0
      %v406 = vsel %vm363, %v337, 0
      %v408 = vsel %vm363, %v340, 0
      %v410 = vsel %vm363, %v342, 0
      %v412 = vsel %vm363, %v345, 0
      %v414 = vsel %vm363, %v347, 0
      %v416 = vsel %vm363, %v350, 0
      %v418 = vsel %vm363, %v352, 0
      %v420 = vsel %vm363, %v355, 0
      %v422 = vsel %vm363, %v357, 0
      %v424 = vsel %vm363, %v360, 0
      %v426 = vsel %vm363, %v362, 0
      %vm428 = vcmask 1043456
      %v430 = vsel %vm428, %v226, 0
      %432 = vmatpush.msra.mxu0 0.0
      %433 = vmatpush.msra.mxu0 0.0
      %434 = vmatpush.msra.mxu0 0.0
      %435 = vmatpush.msra.mxu0 0.0
      %436 = vmatpush.msra.mxu0 0.0
      %437 = vmatpush.msra.mxu0 0.0
      %438 = vmatpush.msra.mxu0 0.0
      %439 = vmatpush.msra.mxu0 0.0
      %440 = vmatpush.msra.mxu0 0.0
      %441 = vmatpush.msra.mxu0 0.0
      %442 = vmatpush.msra.mxu0 0.0
      %443 = vmatpush.msra.mxu0 0.0
      %444 = vmatpush.msra.mxu0 0.0
      %445 = vmatpush.msra.mxu0 0.0
      %446 = vmatpush.msra.mxu0 0.0
      %447 = vmatpush.msra.mxu0 %v430
      %448 = vmatmul.f32.gmra.mxu0 %v364
      %v449 = vpop.f32.mrf.mxu0
      %v450 = vadd.f32 0.0, %v449
      %451 = vmatmul.f32.gmra.mxu0 %v366
      %v452 = vpop.f32.mrf.mxu0
      %v453 = vadd.f32 0.0, %v452
      %454 = vmatmul.f32.gmra.mxu0 %v368
      %v455 = vpop.f32.mrf.mxu0
      %v456 = vadd.f32 0.0, %v455
      %457 = vmatmul.f32.gmra.mxu0 %v370
      %v458 = vpop.f32.mrf.mxu0
      %v459 = vadd.f32 0.0, %v458
      %460 = vmatmul.f32.gmra.mxu0 %v372
      %v461 = vpop.f32.mrf.mxu0
      %v462 = vadd.f32 0.0, %v461
      %463 = vmatmul.f32.gmra.mxu0 %v374
      %v464 = vpop.f32.mrf.mxu0
      %v465 = vadd.f32 0.0, %v464
      %466 = vmatmul.f32.gmra.mxu0 %v376
      %v467 = vpop.f32.mrf.mxu0
      %v468 = vadd.f32 0.0, %v467
      %469 = vmatmul.f32.gmra.mxu0 %v378
      %v470 = vpop.f32.mrf.mxu0
      %v471 = vadd.f32 0.0, %v470
      %472 = vmatmul.f32.gmra.mxu0 %v380
      %v473 = vpop.f32.mrf.mxu0
      %v474 = vadd.f32 0.0, %v473
      %475 = vmatmul.f32.gmra.mxu0 %v382
      %v476 = vpop.f32.mrf.mxu0
      %v477 = vadd.f32 0.0, %v476
      %478 = vmatmul.f32.gmra.mxu0 %v384
      %v479 = vpop.f32.mrf.mxu0
      %v480 = vadd.f32 0.0, %v479
      %481 = vmatmul.f32.gmra.mxu0 %v386
      %v482 = vpop.f32.mrf.mxu0
      %v483 = vadd.f32 0.0, %v482
      %484 = vmatmul.f32.gmra.mxu0 %v388
      %v485 = vpop.f32.mrf.mxu0
      %v486 = vadd.f32 0.0, %v485
      %487 = vmatmul.f32.gmra.mxu0 %v390
      %v488 = vpop.f32.mrf.mxu0
      %v489 = vadd.f32 0.0, %v488
      %490 = vmatmul.f32.gmra.mxu0 %v392
      %v491 = vpop.f32.mrf.mxu0
      %v492 = vadd.f32 0.0, %v491
      %493 = vmatmul.f32.gmra.mxu0 %v394
      %v494 = vpop.f32.mrf.mxu0
      %v495 = vadd.f32 0.0, %v494
      %496 = vmatmul.f32.gmra.mxu0 %v396
      %v497 = vpop.f32.mrf.mxu0
      %v498 = vadd.f32 0.0, %v497
      %499 = vmatmul.f32.gmra.mxu0 %v398
      %v500 = vpop.f32.mrf.mxu0
      %v501 = vadd.f32 0.0, %v500
      %502 = vmatmul.f32.gmra.mxu0 %v400
      %v503 = vpop.f32.mrf.mxu0
      %v504 = vadd.f32 0.0, %v503
      %505 = vmatmul.f32.gmra.mxu0 %v402
      %v506 = vpop.f32.mrf.mxu0
      %v507 = vadd.f32 0.0, %v506
      %508 = vmatmul.f32.gmra.mxu0 %v404
      %v509 = vpop.f32.mrf.mxu0
      %v510 = vadd.f32 0.0, %v509
      %511 = vmatmul.f32.gmra.mxu0 %v406
      %v512 = vpop.f32.mrf.mxu0
      %v513 = vadd.f32 0.0, %v512
      %514 = vmatmul.f32.gmra.mxu0 %v408
      %v515 = vpop.f32.mrf.mxu0
      %v516 = vadd.f32 0.0, %v515
      %517 = vmatmul.f32.gmra.mxu0 %v410
      %v518 = vpop.f32.mrf.mxu0
      %v519 = vadd.f32 0.0, %v518
      %520 = vmatmul.f32.gmra.mxu0 %v412
      %v521 = vpop.f32.mrf.mxu0
      %v522 = vadd.f32 0.0, %v521
      %523 = vmatmul.f32.gmra.mxu0 %v414
      %v524 = vpop.f32.mrf.mxu0
      %v525 = vadd.f32 0.0, %v524
      %526 = vmatmul.f32.gmra.mxu0 %v416
      %v527 = vpop.f32.mrf.mxu0
      %v528 = vadd.f32 0.0, %v527
      %529 = vmatmul.f32.gmra.mxu0 %v418
      %v530 = vpop.f32.mrf.mxu0
      %v531 = vadd.f32 0.0, %v530
      %532 = vmatmul.f32.gmra.mxu0 %v420
      %v533 = vpop.f32.mrf.mxu0
      %v534 = vadd.f32 0.0, %v533
      %535 = vmatmul.f32.gmra.mxu0 %v422
      %v536 = vpop.f32.mrf.mxu0
      %v537 = vadd.f32 0.0, %v536
      %538 = vmatmul.f32.gmra.mxu0 %v424
      %v539 = vpop.f32.mrf.mxu0
      %v540 = vadd.f32 0.0, %v539
      %541 = vmatmul.f32.gmra.mxu0 %v426
      %v542 = vpop.f32.mrf.mxu0
      %v543 = vadd.f32 0.0, %v542
      %544 = vdwg.mxu0
      %v545 = vsel %vm363, %v171, 0
      %v547 = vsel %vm363, %v172, 0
      %v549 = vsel %vm363, %v174, 0
      %v551 = vsel %vm363, %v175, 0
      %v553 = vsel %vm363, %v177, 0
      %v555 = vsel %vm363, %v178, 0
      %v557 = vsel %vm363, %v180, 0
      %v559 = vsel %vm363, %v181, 0
      %v561 = vsel %vm363, %v183, 0
      %v563 = vsel %vm363, %v184, 0
      %v565 = vsel %vm363, %v186, 0
      %v567 = vsel %vm363, %v187, 0
      %v569 = vsel %vm363, %v189, 0
      %v571 = vsel %vm363, %v190, 0
      %v573 = vsel %vm363, %v192, 0
      %v575 = vsel %vm363, %v193, 0
      %v577 = vsel %vm363, %v195, 0
      %v579 = vsel %vm363, %v196, 0
      %v581 = vsel %vm363, %v198, 0
      %v583 = vsel %vm363, %v199, 0
      %v585 = vsel %vm363, %v201, 0
      %v587 = vsel %vm363, %v202, 0
      %v589 = vsel %vm363, %v204, 0
      %v591 = vsel %vm363, %v205, 0
      %v593 = vsel %vm363, %v207, 0
      %v595 = vsel %vm363, %v208, 0
      %v597 = vsel %vm363, %v210, 0
      %v599 = vsel %vm363, %v211, 0
      %v601 = vsel %vm363, %v213, 0
      %v603 = vsel %vm363, %v214, 0
      %v605 = vsel %vm363, %v216, 0
      %v607 = vsel %vm363, %v217, 0
      %v610 = vsel %vm428, %v225, 0
      %612 = vmatpush.msra.mxu0 0.0
      %613 = vmatpush.msra.mxu0 0.0
      %614 = vmatpush.msra.mxu0 0.0
      %615 = vmatpush.msra.mxu0 0.0
      %616 = vmatpush.msra.mxu0 0.0
      %617 = vmatpush.msra.mxu0 0.0
      %618 = vmatpush.msra.mxu0 0.0
      %619 = vmatpush.msra.mxu0 0.0
      %620 = vmatpush.msra.mxu0 0.0
      %621 = vmatpush.msra.mxu0 0.0
      %622 = vmatpush.msra.mxu0 0.0
      %623 = vmatpush.msra.mxu0 0.0
      %624 = vmatpush.msra.mxu0 0.0
      %625 = vmatpush.msra.mxu0 0.0
      %626 = vmatpush.msra.mxu0 0.0
      %627 = vmatpush.msra.mxu0 %v610
      %628 = vmatmul.f32.gmra.mxu0 %v545
      %v629 = vpop.f32.mrf.mxu0
      %v630 = vadd.f32 %v450, %v629
      %631 = vmatmul.f32.gmra.mxu0 %v547
      %v632 = vpop.f32.mrf.mxu0
      %v633 = vadd.f32 %v453, %v632
      %634 = vmatmul.f32.gmra.mxu0 %v549
      %v635 = vpop.f32.mrf.mxu0
      %v636 = vadd.f32 %v456, %v635
      %637 = vmatmul.f32.gmra.mxu0 %v551
      %v638 = vpop.f32.mrf.mxu0
      %v639 = vadd.f32 %v459, %v638
      %640 = vmatmul.f32.gmra.mxu0 %v553
      %v641 = vpop.f32.mrf.mxu0
      %v642 = vadd.f32 %v462, %v641
      %643 = vmatmul.f32.gmra.mxu0 %v555
      %v644 = vpop.f32.mrf.mxu0
      %v645 = vadd.f32 %v465, %v644
      %646 = vmatmul.f32.gmra.mxu0 %v557
      %v647 = vpop.f32.mrf.mxu0
      %v648 = vadd.f32 %v468, %v647
      %649 = vmatmul.f32.gmra.mxu0 %v559
      %v650 = vpop.f32.mrf.mxu0
      %v651 = vadd.f32 %v471, %v650
      %652 = vmatmul.f32.gmra.mxu0 %v561
      %v653 = vpop.f32.mrf.mxu0
      %v654 = vadd.f32 %v474, %v653
      %655 = vmatmul.f32.gmra.mxu0 %v563
      %v656 = vpop.f32.mrf.mxu0
      %v657 = vadd.f32 %v477, %v656
      %658 = vmatmul.f32.gmra.mxu0 %v565
      %v659 = vpop.f32.mrf.mxu0
      %v660 = vadd.f32 %v480, %v659
      %661 = vmatmul.f32.gmra.mxu0 %v567
      %v662 = vpop.f32.mrf.mxu0
      %v663 = vadd.f32 %v483, %v662
      %664 = vmatmul.f32.gmra.mxu0 %v569
      %v665 = vpop.f32.mrf.mxu0
      %v666 = vadd.f32 %v486, %v665
      %667 = vmatmul.f32.gmra.mxu0 %v571
      %v668 = vpop.f32.mrf.mxu0
      %v669 = vadd.f32 %v489, %v668
      %670 = vmatmul.f32.gmra.mxu0 %v573
      %v671 = vpop.f32.mrf.mxu0
      %v672 = vadd.f32 %v492, %v671
      %673 = vmatmul.f32.gmra.mxu0 %v575
      %v674 = vpop.f32.mrf.mxu0
      %v675 = vadd.f32 %v495, %v674
      %676 = vmatmul.f32.gmra.mxu0 %v577
      %v677 = vpop.f32.mrf.mxu0
      %v678 = vadd.f32 %v498, %v677
      %679 = vmatmul.f32.gmra.mxu0 %v579
      %v680 = vpop.f32.mrf.mxu0
      %v681 = vadd.f32 %v501, %v680
      %682 = vmatmul.f32.gmra.mxu0 %v581
      %v683 = vpop.f32.mrf.mxu0
      %v684 = vadd.f32 %v504, %v683
      %685 = vmatmul.f32.gmra.mxu0 %v583
      %v686 = vpop.f32.mrf.mxu0
      %v687 = vadd.f32 %v507, %v686
      %688 = vmatmul.f32.gmra.mxu0 %v585
      %v689 = vpop.f32.mrf.mxu0
      %v690 = vadd.f32 %v510, %v689
      %691 = vmatmul.f32.gmra.mxu0 %v587
      %v692 = vpop.f32.mrf.mxu0
      %v693 = vadd.f32 %v513, %v692
      %694 = vmatmul.f32.gmra.mxu0 %v589
      %v695 = vpop.f32.mrf.mxu0
      %v696 = vadd.f32 %v516, %v695
      %697 = vmatmul.f32.gmra.mxu0 %v591
      %v698 = vpop.f32.mrf.mxu0
      %v699 = vadd.f32 %v519, %v698
      %700 = vmatmul.f32.gmra.mxu0 %v593
      %v701 = vpop.f32.mrf.mxu0
      %v702 = vadd.f32 %v522, %v701
      %703 = vmatmul.f32.gmra.mxu0 %v595
      %v704 = vpop.f32.mrf.mxu0
      %v705 = vadd.f32 %v525, %v704
      %706 = vmatmul.f32.gmra.mxu0 %v597
      %v707 = vpop.f32.mrf.mxu0
      %v708 = vadd.f32 %v528, %v707
      %709 = vmatmul.f32.gmra.mxu0 %v599
      %v710 = vpop.f32.mrf.mxu0
      %v711 = vadd.f32 %v531, %v710
      %712 = vmatmul.f32.gmra.mxu0 %v601
      %v713 = vpop.f32.mrf.mxu0
      %v714 = vadd.f32 %v534, %v713
      %715 = vmatmul.f32.gmra.mxu0 %v603
      %v716 = vpop.f32.mrf.mxu0
      %v717 = vadd.f32 %v537, %v716
      %718 = vmatmul.f32.gmra.mxu0 %v605
      %v719 = vpop.f32.mrf.mxu0
      %v720 = vadd.f32 %v540, %v719
      %721 = vmatmul.f32.gmra.mxu0 %v607
      %v722 = vpop.f32.mrf.mxu0
      %v723 = vadd.f32 %v543, %v722
      %724 = vdwg.mxu0
      %vm725 = vcmask 1045504
      %v726 = vrot.slane %v171, 2
      %v727 = vrot.slane %v172, 2
      %v728 = vsel %vm725, %v726, %v727
      %v729 = vrot.slane %v173, 2
      %v730 = vsel %vm725, %v727, %v729
      %v731 = vrot.slane %v174, 2
      %v732 = vrot.slane %v175, 2
      %v733 = vsel %vm725, %v731, %v732
      %v734 = vrot.slane %v176, 2
      %v735 = vsel %vm725, %v732, %v734
      %v736 = vrot.slane %v177, 2
      %v737 = vrot.slane %v178, 2
      %v738 = vsel %vm725, %v736, %v737
      %v739 = vrot.slane %v179, 2
      %v740 = vsel %vm725, %v737, %v739
      %v741 = vrot.slane %v180, 2
      %v742 = vrot.slane %v181, 2
      %v743 = vsel %vm725, %v741, %v742
      %v744 = vrot.slane %v182, 2
      %v745 = vsel %vm725, %v742, %v744
      %v746 = vrot.slane %v183, 2
      %v747 = vrot.slane %v184, 2
      %v748 = vsel %vm725, %v746, %v747
      %v749 = vrot.slane %v185, 2
      %v750 = vsel %vm725, %v747, %v749
      %v751 = vrot.slane %v186, 2
      %v752 = vrot.slane %v187, 2
      %v753 = vsel %vm725, %v751, %v752
      %v754 = vrot.slane %v188, 2
      %v755 = vsel %vm725, %v752, %v754
      %v756 = vrot.slane %v189, 2
      %v757 = vrot.slane %v190, 2
      %v758 = vsel %vm725, %v756, %v757
      %v759 = vrot.slane %v191, 2
      %v760 = vsel %vm725, %v757, %v759
      %v761 = vrot.slane %v192, 2
      %v762 = vrot.slane %v193, 2
      %v763 = vsel %vm725, %v761, %v762
      %v764 = vrot.slane %v194, 2
      %v765 = vsel %vm725, %v762, %v764
      %v766 = vrot.slane %v195, 2
      %v767 = vrot.slane %v196, 2
      %v768 = vsel %vm725, %v766, %v767
      %v769 = vrot.slane %v197, 2
      %v770 = vsel %vm725, %v767, %v769
      %v771 = vrot.slane %v198, 2
      %v772 = vrot.slane %v199, 2
      %v773 = vsel %vm725, %v771, %v772
      %v774 = vrot.slane %v200, 2
      %v775 = vsel %vm725, %v772, %v774
      %v776 = vrot.slane %v201, 2
      %v777 = vrot.slane %v202, 2
      %v778 = vsel %vm725, %v776, %v777
      %v779 = vrot.slane %v203, 2
      %v780 = vsel %vm725, %v777, %v779
      %v781 = vrot.slane %v204, 2
      %v782 = vrot.slane %v205, 2
      %v783 = vsel %vm725, %v781, %v782
      %v784 = vrot.slane %v206, 2
      %v785 = vsel %vm725, %v782, %v784
      %v786 = vrot.slane %v207, 2
      %v787 = vrot.slane %v208, 2
      %v788 = vsel %vm725, %v786, %v787
      %v789 = vrot.slane %v209, 2
      %v790 = vsel %vm725, %v787, %v789
      %v791 = vrot.slane %v210, 2
      %v792 = vrot.slane %v211, 2
      %v793 = vsel %vm725, %v791, %v792
      %v794 = vrot.slane %v212, 2
      %v795 = vsel %vm725, %v792, %v794
      %v796 = vrot.slane %v213, 2
      %v797 = vrot.slane %v214, 2
      %v798 = vsel %vm725, %v796, %v797
      %v799 = vrot.slane %v215, 2
      %v800 = vsel %vm725, %v797, %v799
      %v801 = vrot.slane %v216, 2
      %v802 = vrot.slane %v217, 2
      %v803 = vsel %vm725, %v801, %v802
      %v804 = vrot.slane %v218, 2
      %v805 = vsel %vm725, %v802, %v804
      %v806 = vsel %vm363, %v728, 0
      %v808 = vsel %vm363, %v730, 0
      %v810 = vsel %vm363, %v733, 0
      %v812 = vsel %vm363, %v735, 0
      %v814 = vsel %vm363, %v738, 0
      %v816 = vsel %vm363, %v740, 0
      %v818 = vsel %vm363, %v743, 0
      %v820 = vsel %vm363, %v745, 0
      %v822 = vsel %vm363, %v748, 0
      %v824 = vsel %vm363, %v750, 0
      %v826 = vsel %vm363, %v753, 0
      %v828 = vsel %vm363, %v755, 0
      %v830 = vsel %vm363, %v758, 0
      %v832 = vsel %vm363, %v760, 0
      %v834 = vsel %vm363, %v763, 0
      %v836 = vsel %vm363, %v765, 0
      %v838 = vsel %vm363, %v768, 0
      %v840 = vsel %vm363, %v770, 0
      %v842 = vsel %vm363, %v773, 0
      %v844 = vsel %vm363, %v775, 0
      %v846 = vsel %vm363, %v778, 0
      %v848 = vsel %vm363, %v780, 0
      %v850 = vsel %vm363, %v783, 0
      %v852 = vsel %vm363, %v785, 0
      %v854 = vsel %vm363, %v788, 0
      %v856 = vsel %vm363, %v790, 0
      %v858 = vsel %vm363, %v793, 0
      %v860 = vsel %vm363, %v795, 0
      %v862 = vsel %vm363, %v798, 0
      %v864 = vsel %vm363, %v800, 0
      %v866 = vsel %vm363, %v803, 0
      %v868 = vsel %vm363, %v805, 0
      %v871 = vsel %vm428, %v227, 0
      %873 = vmatpush.msra.mxu0 0.0
      %874 = vmatpush.msra.mxu0 0.0
      %875 = vmatpush.msra.mxu0 0.0
      %876 = vmatpush.msra.mxu0 0.0
      %877 = vmatpush.msra.mxu0 0.0
      %878 = vmatpush.msra.mxu0 0.0
      %879 = vmatpush.msra.mxu0 0.0
      %880 = vmatpush.msra.mxu0 0.0
      %881 = vmatpush.msra.mxu0 0.0
      %882 = vmatpush.msra.mxu0 0.0
      %883 = vmatpush.msra.mxu0 0.0
      %884 = vmatpush.msra.mxu0 0.0
      %885 = vmatpush.msra.mxu0 0.0
      %886 = vmatpush.msra.mxu0 0.0
      %887 = vmatpush.msra.mxu0 0.0
      %888 = vmatpush.msra.mxu0 %v871
      %889 = vmatmul.f32.gmra.mxu0 %v806
      %v890 = vpop.f32.mrf.mxu0
      %v891 = vadd.f32 0.0, %v890
      %892 = vmatmul.f32.gmra.mxu0 %v808
      %v893 = vpop.f32.mrf.mxu0
      %v894 = vadd.f32 0.0, %v893
      %895 = vmatmul.f32.gmra.mxu0 %v810
      %v896 = vpop.f32.mrf.mxu0
      %v897 = vadd.f32 0.0, %v896
      %898 = vmatmul.f32.gmra.mxu0 %v812
      %v899 = vpop.f32.mrf.mxu0
      %v900 = vadd.f32 0.0, %v899
      %901 = vmatmul.f32.gmra.mxu0 %v814
      %v902 = vpop.f32.mrf.mxu0
      %v903 = vadd.f32 0.0, %v902
      %904 = vmatmul.f32.gmra.mxu0 %v816
      %v905 = vpop.f32.mrf.mxu0
      %v906 = vadd.f32 0.0, %v905
      %907 = vmatmul.f32.gmra.mxu0 %v818
      %v908 = vpop.f32.mrf.mxu0
      %v909 = vadd.f32 0.0, %v908
      %910 = vmatmul.f32.gmra.mxu0 %v820
      %v911 = vpop.f32.mrf.mxu0
      %v912 = vadd.f32 0.0, %v911
      %913 = vmatmul.f32.gmra.mxu0 %v822
      %v914 = vpop.f32.mrf.mxu0
      %v915 = vadd.f32 0.0, %v914
      %916 = vmatmul.f32.gmra.mxu0 %v824
      %v917 = vpop.f32.mrf.mxu0
      %v918 = vadd.f32 0.0, %v917
      %919 = vmatmul.f32.gmra.mxu0 %v826
      %v920 = vpop.f32.mrf.mxu0
      %v921 = vadd.f32 0.0, %v920
      %922 = vmatmul.f32.gmra.mxu0 %v828
      %v923 = vpop.f32.mrf.mxu0
      %v924 = vadd.f32 0.0, %v923
      %925 = vmatmul.f32.gmra.mxu0 %v830
      %v926 = vpop.f32.mrf.mxu0
      %v927 = vadd.f32 0.0, %v926
      %928 = vmatmul.f32.gmra.mxu0 %v832
      %v929 = vpop.f32.mrf.mxu0
      %v930 = vadd.f32 0.0, %v929
      %931 = vmatmul.f32.gmra.mxu0 %v834
      %v932 = vpop.f32.mrf.mxu0
      %v933 = vadd.f32 0.0, %v932
      %934 = vmatmul.f32.gmra.mxu0 %v836
      %v935 = vpop.f32.mrf.mxu0
      %v936 = vadd.f32 0.0, %v935
      %937 = vmatmul.f32.gmra.mxu0 %v838
      %v938 = vpop.f32.mrf.mxu0
      %v939 = vadd.f32 0.0, %v938
      %940 = vmatmul.f32.gmra.mxu0 %v840
      %v941 = vpop.f32.mrf.mxu0
      %v942 = vadd.f32 0.0, %v941
      %943 = vmatmul.f32.gmra.mxu0 %v842
      %v944 = vpop.f32.mrf.mxu0
      %v945 = vadd.f32 0.0, %v944
      %946 = vmatmul.f32.gmra.mxu0 %v844
      %v947 = vpop.f32.mrf.mxu0
      %v948 = vadd.f32 0.0, %v947
      %949 = vmatmul.f32.gmra.mxu0 %v846
      %v950 = vpop.f32.mrf.mxu0
      %v951 = vadd.f32 0.0, %v950
      %952 = vmatmul.f32.gmra.mxu0 %v848
      %v953 = vpop.f32.mrf.mxu0
      %v954 = vadd.f32 0.0, %v953
      %955 = vmatmul.f32.gmra.mxu0 %v850
      %v956 = vpop.f32.mrf.mxu0
      %v957 = vadd.f32 0.0, %v956
      %958 = vmatmul.f32.gmra.mxu0 %v852
      %v959 = vpop.f32.mrf.mxu0
      %v960 = vadd.f32 0.0, %v959
      %961 = vmatmul.f32.gmra.mxu0 %v854
      %v962 = vpop.f32.mrf.mxu0
      %v963 = vadd.f32 0.0, %v962
      %964 = vmatmul.f32.gmra.mxu0 %v856
      %v965 = vpop.f32.mrf.mxu0
      %v966 = vadd.f32 0.0, %v965
      %967 = vmatmul.f32.gmra.mxu0 %v858
      %v968 = vpop.f32.mrf.mxu0
      %v969 = vadd.f32 0.0, %v968
      %970 = vmatmul.f32.gmra.mxu0 %v860
      %v971 = vpop.f32.mrf.mxu0
      %v972 = vadd.f32 0.0, %v971
      %973 = vmatmul.f32.gmra.mxu0 %v862
      %v974 = vpop.f32.mrf.mxu0
      %v975 = vadd.f32 0.0, %v974
      %976 = vmatmul.f32.gmra.mxu0 %v864
      %v977 = vpop.f32.mrf.mxu0
      %v978 = vadd.f32 0.0, %v977
      %979 = vmatmul.f32.gmra.mxu0 %v866
      %v980 = vpop.f32.mrf.mxu0
      %v981 = vadd.f32 0.0, %v980
      %982 = vmatmul.f32.gmra.mxu0 %v868
      %v983 = vpop.f32.mrf.mxu0
      %v984 = vadd.f32 0.0, %v983
      %985 = vdwg.mxu0
      %v986 = vadd.f32 %v630, %v891
      %v987 = vadd.f32 %v633, %v894
      %v988 = vadd.f32 %v636, %v897
      %v989 = vadd.f32 %v639, %v900
      %v990 = vadd.f32 %v642, %v903
      %v991 = vadd.f32 %v645, %v906
      %v992 = vadd.f32 %v648, %v909
      %v993 = vadd.f32 %v651, %v912
      %v994 = vadd.f32 %v654, %v915
      %v995 = vadd.f32 %v657, %v918
      %v996 = vadd.f32 %v660, %v921
      %v997 = vadd.f32 %v663, %v924
      %v998 = vadd.f32 %v666, %v927
      %v999 = vadd.f32 %v669, %v930
      %v1000 = vadd.f32 %v672, %v933
      %v1001 = vadd.f32 %v675, %v936
      %v1002 = vadd.f32 %v678, %v939
      %v1003 = vadd.f32 %v681, %v942
      %v1004 = vadd.f32 %v684, %v945
      %v1005 = vadd.f32 %v687, %v948
      %v1006 = vadd.f32 %v690, %v951
      %v1007 = vadd.f32 %v693, %v954
      %v1008 = vadd.f32 %v696, %v957
      %v1009 = vadd.f32 %v699, %v960
      %v1010 = vadd.f32 %v702, %v963
      %v1011 = vadd.f32 %v705, %v966
      %v1012 = vadd.f32 %v708, %v969
      %v1013 = vadd.f32 %v711, %v972
      %v1014 = vadd.f32 %v714, %v975
      %v1015 = vadd.f32 %v717, %v978
      %v1016 = vadd.f32 %v720, %v981
      %v1017 = vadd.f32 %v723, %v984
      %v1019 = vsel %vm363, %v219, 0
      %v1022 = vsel %vm363, %v220, 0
      %v1025 = vsel %vm428, %v228, 0
      %1027 = vmatpush.msra.mxu0 0.0
      %1028 = vmatpush.msra.mxu0 0.0
      %1029 = vmatpush.msra.mxu0 0.0
      %1030 = vmatpush.msra.mxu0 0.0
      %1031 = vmatpush.msra.mxu0 0.0
      %1032 = vmatpush.msra.mxu0 0.0
      %1033 = vmatpush.msra.mxu0 0.0
      %1034 = vmatpush.msra.mxu0 0.0
      %1035 = vmatpush.msra.mxu0 0.0
      %1036 = vmatpush.msra.mxu0 0.0
      %1037 = vmatpush.msra.mxu0 0.0
      %1038 = vmatpush.msra.mxu0 0.0
      %1039 = vmatpush.msra.mxu0 0.0
      %1040 = vmatpush.msra.mxu0 0.0
      %1041 = vmatpush.msra.mxu0 0.0
      %1042 = vmatpush.msra.mxu0 %v1025
      %1043 = vmatmul.f32.gmra.mxu0 %v549
      %v1044 = vpop.f32.mrf.mxu0
      %v1045 = vadd.f32 0.0, %v1044
      %1046 = vmatmul.f32.gmra.mxu0 %v551
      %v1047 = vpop.f32.mrf.mxu0
      %v1048 = vadd.f32 0.0, %v1047
      %1049 = vmatmul.f32.gmra.mxu0 %v553
      %v1050 = vpop.f32.mrf.mxu0
      %v1051 = vadd.f32 0.0, %v1050
      %1052 = vmatmul.f32.gmra.mxu0 %v555
      %v1053 = vpop.f32.mrf.mxu0
      %v1054 = vadd.f32 0.0, %v1053
      %1055 = vmatmul.f32.gmra.mxu0 %v557
      %v1056 = vpop.f32.mrf.mxu0
      %v1057 = vadd.f32 0.0, %v1056
      %1058 = vmatmul.f32.gmra.mxu0 %v559
      %v1059 = vpop.f32.mrf.mxu0
      %v1060 = vadd.f32 0.0, %v1059
      %1061 = vmatmul.f32.gmra.mxu0 %v561
      %v1062 = vpop.f32.mrf.mxu0
      %v1063 = vadd.f32 0.0, %v1062
      %1064 = vmatmul.f32.gmra.mxu0 %v563
      %v1065 = vpop.f32.mrf.mxu0
      %v1066 = vadd.f32 0.0, %v1065
      %1067 = vmatmul.f32.gmra.mxu0 %v565
      %v1068 = vpop.f32.mrf.mxu0
      %v1069 = vadd.f32 0.0, %v1068
      %1070 = vmatmul.f32.gmra.mxu0 %v567
      %v1071 = vpop.f32.mrf.mxu0
      %v1072 = vadd.f32 0.0, %v1071
      %1073 = vmatmul.f32.gmra.mxu0 %v569
      %v1074 = vpop.f32.mrf.mxu0
      %v1075 = vadd.f32 0.0, %v1074
      %1076 = vmatmul.f32.gmra.mxu0 %v571
      %v1077 = vpop.f32.mrf.mxu0
      %v1078 = vadd.f32 0.0, %v1077
      %1079 = vmatmul.f32.gmra.mxu0 %v573
      %v1080 = vpop.f32.mrf.mxu0
      %v1081 = vadd.f32 0.0, %v1080
      %1082 = vmatmul.f32.gmra.mxu0 %v575
      %v1083 = vpop.f32.mrf.mxu0
      %v1084 = vadd.f32 0.0, %v1083
      %1085 = vmatmul.f32.gmra.mxu0 %v577
      %v1086 = vpop.f32.mrf.mxu0
      %v1087 = vadd.f32 0.0, %v1086
      %1088 = vmatmul.f32.gmra.mxu0 %v579
      %v1089 = vpop.f32.mrf.mxu0
      %v1090 = vadd.f32 0.0, %v1089
      %1091 = vmatmul.f32.gmra.mxu0 %v581
      %v1092 = vpop.f32.mrf.mxu0
      %v1093 = vadd.f32 0.0, %v1092
      %1094 = vmatmul.f32.gmra.mxu0 %v583
      %v1095 = vpop.f32.mrf.mxu0
      %v1096 = vadd.f32 0.0, %v1095
      %1097 = vmatmul.f32.gmra.mxu0 %v585
      %v1098 = vpop.f32.mrf.mxu0
      %v1099 = vadd.f32 0.0, %v1098
      %1100 = vmatmul.f32.gmra.mxu0 %v587
      %v1101 = vpop.f32.mrf.mxu0
      %v1102 = vadd.f32 0.0, %v1101
      %1103 = vmatmul.f32.gmra.mxu0 %v589
      %v1104 = vpop.f32.mrf.mxu0
      %v1105 = vadd.f32 0.0, %v1104
      %1106 = vmatmul.f32.gmra.mxu0 %v591
      %v1107 = vpop.f32.mrf.mxu0
      %v1108 = vadd.f32 0.0, %v1107
      %1109 = vmatmul.f32.gmra.mxu0 %v593
      %v1110 = vpop.f32.mrf.mxu0
      %v1111 = vadd.f32 0.0, %v1110
      %1112 = vmatmul.f32.gmra.mxu0 %v595
      %v1113 = vpop.f32.mrf.mxu0
      %v1114 = vadd.f32 0.0, %v1113
      %1115 = vmatmul.f32.gmra.mxu0 %v597
      %v1116 = vpop.f32.mrf.mxu0
      %v1117 = vadd.f32 0.0, %v1116
      %1118 = vmatmul.f32.gmra.mxu0 %v599
      %v1119 = vpop.f32.mrf.mxu0
      %v1120 = vadd.f32 0.0, %v1119
      %1121 = vmatmul.f32.gmra.mxu0 %v601
      %v1122 = vpop.f32.mrf.mxu0
      %v1123 = vadd.f32 0.0, %v1122
      %1124 = vmatmul.f32.gmra.mxu0 %v603
      %v1125 = vpop.f32.mrf.mxu0
      %v1126 = vadd.f32 0.0, %v1125
      %1127 = vmatmul.f32.gmra.mxu0 %v605
      %v1128 = vpop.f32.mrf.mxu0
      %v1129 = vadd.f32 0.0, %v1128
      %1130 = vmatmul.f32.gmra.mxu0 %v607
      %v1131 = vpop.f32.mrf.mxu0
      %v1132 = vadd.f32 0.0, %v1131
      %1133 = vmatmul.f32.gmra.mxu0 %v1019
      %v1134 = vpop.f32.mrf.mxu0
      %v1135 = vadd.f32 0.0, %v1134
      %1136 = vmatmul.f32.gmra.mxu0 %v1022
      %v1137 = vpop.f32.mrf.mxu0
      %v1138 = vadd.f32 0.0, %v1137
      %1139 = vdwg.mxu0
      %v1140 = vadd.f32 %v986, %v1045
      %v1141 = vadd.f32 %v987, %v1048
      %v1142 = vadd.f32 %v988, %v1051
      %v1143 = vadd.f32 %v989, %v1054
      %v1144 = vadd.f32 %v990, %v1057
      %v1145 = vadd.f32 %v991, %v1060
      %v1146 = vadd.f32 %v992, %v1063
      %v1147 = vadd.f32 %v993, %v1066
      %v1148 = vadd.f32 %v994, %v1069
      %v1149 = vadd.f32 %v995, %v1072
      %v1150 = vadd.f32 %v996, %v1075
      %v1151 = vadd.f32 %v997, %v1078
      %v1152 = vadd.f32 %v998, %v1081
      %v1153 = vadd.f32 %v999, %v1084
      %v1154 = vadd.f32 %v1000, %v1087
      %v1155 = vadd.f32 %v1001, %v1090
      %v1156 = vadd.f32 %v1002, %v1093
      %v1157 = vadd.f32 %v1003, %v1096
      %v1158 = vadd.f32 %v1004, %v1099
      %v1159 = vadd.f32 %v1005, %v1102
      %v1160 = vadd.f32 %v1006, %v1105
      %v1161 = vadd.f32 %v1007, %v1108
      %v1162 = vadd.f32 %v1008, %v1111
      %v1163 = vadd.f32 %v1009, %v1114
      %v1164 = vadd.f32 %v1010, %v1117
      %v1165 = vadd.f32 %v1011, %v1120
      %v1166 = vadd.f32 %v1012, %v1123
      %v1167 = vadd.f32 %v1013, %v1126
      %v1168 = vadd.f32 %v1014, %v1129
      %v1169 = vadd.f32 %v1015, %v1132
      %v1170 = vadd.f32 %v1016, %v1135
      %v1171 = vadd.f32 %v1017, %v1138
      %v1173 = vrot.slane %v219, 1
      %v1174 = vrot.slane %v220, 1
      %v1175 = vsel %vm282, %v1173, %v1174
      %v1176 = vrot.slane %v221, 1
      %v1177 = vsel %vm282, %v1174, %v1176
      %v1178 = vsel %vm363, %v1175, 0
      %v1180 = vsel %vm363, %v1177, 0
      %v1183 = vsel %vm428, %v229, 0
      %1185 = vmatpush.msra.mxu0 0.0
      %1186 = vmatpush.msra.mxu0 0.0
      %1187 = vmatpush.msra.mxu0 0.0
      %1188 = vmatpush.msra.mxu0 0.0
      %1189 = vmatpush.msra.mxu0 0.0
      %1190 = vmatpush.msra.mxu0 0.0
      %1191 = vmatpush.msra.mxu0 0.0
      %1192 = vmatpush.msra.mxu0 0.0
      %1193 = vmatpush.msra.mxu0 0.0
      %1194 = vmatpush.msra.mxu0 0.0
      %1195 = vmatpush.msra.mxu0 0.0
      %1196 = vmatpush.msra.mxu0 0.0
      %1197 = vmatpush.msra.mxu0 0.0
      %1198 = vmatpush.msra.mxu0 0.0
      %1199 = vmatpush.msra.mxu0 0.0
      %1200 = vmatpush.msra.mxu0 %v1183
      %1201 = vmatmul.f32.gmra.mxu0 %v368
      %v1202 = vpop.f32.mrf.mxu0
      %v1203 = vadd.f32 0.0, %v1202
      %1204 = vmatmul.f32.gmra.mxu0 %v370
      %v1205 = vpop.f32.mrf.mxu0
      %v1206 = vadd.f32 0.0, %v1205
      %1207 = vmatmul.f32.gmra.mxu0 %v372
      %v1208 = vpop.f32.mrf.mxu0
      %v1209 = vadd.f32 0.0, %v1208
      %1210 = vmatmul.f32.gmra.mxu0 %v374
      %v1211 = vpop.f32.mrf.mxu0
      %v1212 = vadd.f32 0.0, %v1211
      %1213 = vmatmul.f32.gmra.mxu0 %v376
      %v1214 = vpop.f32.mrf.mxu0
      %v1215 = vadd.f32 0.0, %v1214
      %1216 = vmatmul.f32.gmra.mxu0 %v378
      %v1217 = vpop.f32.mrf.mxu0
      %v1218 = vadd.f32 0.0, %v1217
      %1219 = vmatmul.f32.gmra.mxu0 %v380
      %v1220 = vpop.f32.mrf.mxu0
      %v1221 = vadd.f32 0.0, %v1220
      %1222 = vmatmul.f32.gmra.mxu0 %v382
      %v1223 = vpop.f32.mrf.mxu0
      %v1224 = vadd.f32 0.0, %v1223
      %1225 = vmatmul.f32.gmra.mxu0 %v384
      %v1226 = vpop.f32.mrf.mxu0
      %v1227 = vadd.f32 0.0, %v1226
      %1228 = vmatmul.f32.gmra.mxu0 %v386
      %v1229 = vpop.f32.mrf.mxu0
      %v1230 = vadd.f32 0.0, %v1229
      %1231 = vmatmul.f32.gmra.mxu0 %v388
      %v1232 = vpop.f32.mrf.mxu0
      %v1233 = vadd.f32 0.0, %v1232
      %1234 = vmatmul.f32.gmra.mxu0 %v390
      %v1235 = vpop.f32.mrf.mxu0
      %v1236 = vadd.f32 0.0, %v1235
      %1237 = vmatmul.f32.gmra.mxu0 %v392
      %v1238 = vpop.f32.mrf.mxu0
      %v1239 = vadd.f32 0.0, %v1238
      %1240 = vmatmul.f32.gmra.mxu0 %v394
      %v1241 = vpop.f32.mrf.mxu0
      %v1242 = vadd.f32 0.0, %v1241
      %1243 = vmatmul.f32.gmra.mxu0 %v396
      %v1244 = vpop.f32.mrf.mxu0
      %v1245 = vadd.f32 0.0, %v1244
      %1246 = vmatmul.f32.gmra.mxu0 %v398
      %v1247 = vpop.f32.mrf.mxu0
      %v1248 = vadd.f32 0.0, %v1247
      %1249 = vmatmul.f32.gmra.mxu0 %v400
      %v1250 = vpop.f32.mrf.mxu0
      %v1251 = vadd.f32 0.0, %v1250
      %1252 = vmatmul.f32.gmra.mxu0 %v402
      %v1253 = vpop.f32.mrf.mxu0
      %v1254 = vadd.f32 0.0, %v1253
      %1255 = vmatmul.f32.gmra.mxu0 %v404
      %v1256 = vpop.f32.mrf.mxu0
      %v1257 = vadd.f32 0.0, %v1256
      %1258 = vmatmul.f32.gmra.mxu0 %v406
      %v1259 = vpop.f32.mrf.mxu0
      %v1260 = vadd.f32 0.0, %v1259
      %1261 = vmatmul.f32.gmra.mxu0 %v408
      %v1262 = vpop.f32.mrf.mxu0
      %v1263 = vadd.f32 0.0, %v1262
      %1264 = vmatmul.f32.gmra.mxu0 %v410
      %v1265 = vpop.f32.mrf.mxu0
      %v1266 = vadd.f32 0.0, %v1265
      %1267 = vmatmul.f32.gmra.mxu0 %v412
      %v1268 = vpop.f32.mrf.mxu0
      %v1269 = vadd.f32 0.0, %v1268
      %1270 = vmatmul.f32.gmra.mxu0 %v414
      %v1271 = vpop.f32.mrf.mxu0
      %v1272 = vadd.f32 0.0, %v1271
      %1273 = vmatmul.f32.gmra.mxu0 %v416
      %v1274 = vpop.f32.mrf.mxu0
      %v1275 = vadd.f32 0.0, %v1274
      %1276 = vmatmul.f32.gmra.mxu0 %v418
      %v1277 = vpop.f32.mrf.mxu0
      %v1278 = vadd.f32 0.0, %v1277
      %1279 = vmatmul.f32.gmra.mxu0 %v420
      %v1280 = vpop.f32.mrf.mxu0
      %v1281 = vadd.f32 0.0, %v1280
      %1282 = vmatmul.f32.gmra.mxu0 %v422
      %v1283 = vpop.f32.mrf.mxu0
      %v1284 = vadd.f32 0.0, %v1283
      %1285 = vmatmul.f32.gmra.mxu0 %v424
      %v1286 = vpop.f32.mrf.mxu0
      %v1287 = vadd.f32 0.0, %v1286
      %1288 = vmatmul.f32.gmra.mxu0 %v426
      %v1289 = vpop.f32.mrf.mxu0
      %v1290 = vadd.f32 0.0, %v1289
      %1291 = vmatmul.f32.gmra.mxu0 %v1178
      %v1292 = vpop.f32.mrf.mxu0
      %v1293 = vadd.f32 0.0, %v1292
      %1294 = vmatmul.f32.gmra.mxu0 %v1180
      %v1295 = vpop.f32.mrf.mxu0
      %v1296 = vadd.f32 0.0, %v1295
      %1297 = vdwg.mxu0
      %v1298 = vadd.f32 %v1140, %v1203
      %v1299 = vadd.f32 %v1141, %v1206
      %v1300 = vadd.f32 %v1142, %v1209
      %v1301 = vadd.f32 %v1143, %v1212
      %v1302 = vadd.f32 %v1144, %v1215
      %v1303 = vadd.f32 %v1145, %v1218
      %v1304 = vadd.f32 %v1146, %v1221
      %v1305 = vadd.f32 %v1147, %v1224
      %v1306 = vadd.f32 %v1148, %v1227
      %v1307 = vadd.f32 %v1149, %v1230
      %v1308 = vadd.f32 %v1150, %v1233
      %v1309 = vadd.f32 %v1151, %v1236
      %v1310 = vadd.f32 %v1152, %v1239
      %v1311 = vadd.f32 %v1153, %v1242
      %v1312 = vadd.f32 %v1154, %v1245
      %v1313 = vadd.f32 %v1155, %v1248
      %v1314 = vadd.f32 %v1156, %v1251
      %v1315 = vadd.f32 %v1157, %v1254
      %v1316 = vadd.f32 %v1158, %v1257
      %v1317 = vadd.f32 %v1159, %v1260
      %v1318 = vadd.f32 %v1160, %v1263
      %v1319 = vadd.f32 %v1161, %v1266
      %v1320 = vadd.f32 %v1162, %v1269
      %v1321 = vadd.f32 %v1163, %v1272
      %v1322 = vadd.f32 %v1164, %v1275
      %v1323 = vadd.f32 %v1165, %v1278
      %v1324 = vadd.f32 %v1166, %v1281
      %v1325 = vadd.f32 %v1167, %v1284
      %v1326 = vadd.f32 %v1168, %v1287
      %v1327 = vadd.f32 %v1169, %v1290
      %v1328 = vadd.f32 %v1170, %v1293
      %v1329 = vadd.f32 %v1171, %v1296
      %v1330 = vrot.slane %v219, 2
      %v1331 = vrot.slane %v220, 2
      %v1332 = vsel %vm725, %v1330, %v1331
      %v1333 = vrot.slane %v221, 2
      %v1334 = vsel %vm725, %v1331, %v1333
      %v1335 = vsel %vm363, %v1332, 0
      %v1337 = vsel %vm363, %v1334, 0
      %v1340 = vsel %vm428, %v230, 0
      %1342 = vmatpush.msra.mxu0 0.0
      %1343 = vmatpush.msra.mxu0 0.0
      %1344 = vmatpush.msra.mxu0 0.0
      %1345 = vmatpush.msra.mxu0 0.0
      %1346 = vmatpush.msra.mxu0 0.0
      %1347 = vmatpush.msra.mxu0 0.0
      %1348 = vmatpush.msra.mxu0 0.0
      %1349 = vmatpush.msra.mxu0 0.0
      %1350 = vmatpush.msra.mxu0 0.0
      %1351 = vmatpush.msra.mxu0 0.0
      %1352 = vmatpush.msra.mxu0 0.0
      %1353 = vmatpush.msra.mxu0 0.0
      %1354 = vmatpush.msra.mxu0 0.0
      %1355 = vmatpush.msra.mxu0 0.0
      %1356 = vmatpush.msra.mxu0 0.0
      %1357 = vmatpush.msra.mxu0 %v1340
      %1358 = vmatmul.f32.gmra.mxu0 %v810
      %v1359 = vpop.f32.mrf.mxu0
      %v1360 = vadd.f32 0.0, %v1359
      %1361 = vmatmul.f32.gmra.mxu0 %v812
      %v1362 = vpop.f32.mrf.mxu0
      %v1363 = vadd.f32 0.0, %v1362
      %1364 = vmatmul.f32.gmra.mxu0 %v814
      %v1365 = vpop.f32.mrf.mxu0
      %v1366 = vadd.f32 0.0, %v1365
      %1367 = vmatmul.f32.gmra.mxu0 %v816
      %v1368 = vpop.f32.mrf.mxu0
      %v1369 = vadd.f32 0.0, %v1368
      %1370 = vmatmul.f32.gmra.mxu0 %v818
      %v1371 = vpop.f32.mrf.mxu0
      %v1372 = vadd.f32 0.0, %v1371
      %1373 = vmatmul.f32.gmra.mxu0 %v820
      %v1374 = vpop.f32.mrf.mxu0
      %v1375 = vadd.f32 0.0, %v1374
      %1376 = vmatmul.f32.gmra.mxu0 %v822
      %v1377 = vpop.f32.mrf.mxu0
      %v1378 = vadd.f32 0.0, %v1377
      %1379 = vmatmul.f32.gmra.mxu0 %v824
      %v1380 = vpop.f32.mrf.mxu0
      %v1381 = vadd.f32 0.0, %v1380
      %1382 = vmatmul.f32.gmra.mxu0 %v826
      %v1383 = vpop.f32.mrf.mxu0
      %v1384 = vadd.f32 0.0, %v1383
      %1385 = vmatmul.f32.gmra.mxu0 %v828
      %v1386 = vpop.f32.mrf.mxu0
      %v1387 = vadd.f32 0.0, %v1386
      %1388 = vmatmul.f32.gmra.mxu0 %v830
      %v1389 = vpop.f32.mrf.mxu0
      %v1390 = vadd.f32 0.0, %v1389
      %1391 = vmatmul.f32.gmra.mxu0 %v832
      %v1392 = vpop.f32.mrf.mxu0
      %v1393 = vadd.f32 0.0, %v1392
      %1394 = vmatmul.f32.gmra.mxu0 %v834
      %v1395 = vpop.f32.mrf.mxu0
      %v1396 = vadd.f32 0.0, %v1395
      %1397 = vmatmul.f32.gmra.mxu0 %v836
      %v1398 = vpop.f32.mrf.mxu0
      %v1399 = vadd.f32 0.0, %v1398
      %1400 = vmatmul.f32.gmra.mxu0 %v838
      %v1401 = vpop.f32.mrf.mxu0
      %v1402 = vadd.f32 0.0, %v1401
      %1403 = vmatmul.f32.gmra.mxu0 %v840
      %v1404 = vpop.f32.mrf.mxu0
      %v1405 = vadd.f32 0.0, %v1404
      %1406 = vmatmul.f32.gmra.mxu0 %v842
      %v1407 = vpop.f32.mrf.mxu0
      %v1408 = vadd.f32 0.0, %v1407
      %1409 = vmatmul.f32.gmra.mxu0 %v844
      %v1410 = vpop.f32.mrf.mxu0
      %v1411 = vadd.f32 0.0, %v1410
      %1412 = vmatmul.f32.gmra.mxu0 %v846
      %v1413 = vpop.f32.mrf.mxu0
      %v1414 = vadd.f32 0.0, %v1413
      %1415 = vmatmul.f32.gmra.mxu0 %v848
      %v1416 = vpop.f32.mrf.mxu0
      %v1417 = vadd.f32 0.0, %v1416
      %1418 = vmatmul.f32.gmra.mxu0 %v850
      %v1419 = vpop.f32.mrf.mxu0
      %v1420 = vadd.f32 0.0, %v1419
      %1421 = vmatmul.f32.gmra.mxu0 %v852
      %v1422 = vpop.f32.mrf.mxu0
      %v1423 = vadd.f32 0.0, %v1422
      %1424 = vmatmul.f32.gmra.mxu0 %v854
      %v1425 = vpop.f32.mrf.mxu0
      %v1426 = vadd.f32 0.0, %v1425
      %1427 = vmatmul.f32.gmra.mxu0 %v856
      %v1428 = vpop.f32.mrf.mxu0
      %v1429 = vadd.f32 0.0, %v1428
      %1430 = vmatmul.f32.gmra.mxu0 %v858
      %v1431 = vpop.f32.mrf.mxu0
      %v1432 = vadd.f32 0.0, %v1431
      %1433 = vmatmul.f32.gmra.mxu0 %v860
      %v1434 = vpop.f32.mrf.mxu0
      %v1435 = vadd.f32 0.0, %v1434
      %1436 = vmatmul.f32.gmra.mxu0 %v862
      %v1437 = vpop.f32.mrf.mxu0
      %v1438 = vadd.f32 0.0, %v1437
      %1439 = vmatmul.f32.gmra.mxu0 %v864
      %v1440 = vpop.f32.mrf.mxu0
      %v1441 = vadd.f32 0.0, %v1440
      %1442 = vmatmul.f32.gmra.mxu0 %v866
      %v1443 = vpop.f32.mrf.mxu0
      %v1444 = vadd.f32 0.0, %v1443
      %1445 = vmatmul.f32.gmra.mxu0 %v868
      %v1446 = vpop.f32.mrf.mxu0
      %v1447 = vadd.f32 0.0, %v1446
      %1448 = vmatmul.f32.gmra.mxu0 %v1335
      %v1449 = vpop.f32.mrf.mxu0
      %v1450 = vadd.f32 0.0, %v1449
      %1451 = vmatmul.f32.gmra.mxu0 %v1337
      %v1452 = vpop.f32.mrf.mxu0
      %v1453 = vadd.f32 0.0, %v1452
      %1454 = vdwg.mxu0
      %v1455 = vadd.f32 %v1298, %v1360
      %v1456 = vadd.f32 %v1299, %v1363
      %v1457 = vadd.f32 %v1300, %v1366
      %v1458 = vadd.f32 %v1301, %v1369
      %v1459 = vadd.f32 %v1302, %v1372
      %v1460 = vadd.f32 %v1303, %v1375
      %v1461 = vadd.f32 %v1304, %v1378
      %v1462 = vadd.f32 %v1305, %v1381
      %v1463 = vadd.f32 %v1306, %v1384
      %v1464 = vadd.f32 %v1307, %v1387
      %v1465 = vadd.f32 %v1308, %v1390
      %v1466 = vadd.f32 %v1309, %v1393
      %v1467 = vadd.f32 %v1310, %v1396
      %v1468 = vadd.f32 %v1311, %v1399
      %v1469 = vadd.f32 %v1312, %v1402
      %v1470 = vadd.f32 %v1313, %v1405
      %v1471 = vadd.f32 %v1314, %v1408
      %v1472 = vadd.f32 %v1315, %v1411
      %v1473 = vadd.f32 %v1316, %v1414
      %v1474 = vadd.f32 %v1317, %v1417
      %v1475 = vadd.f32 %v1318, %v1420
      %v1476 = vadd.f32 %v1319, %v1423
      %v1477 = vadd.f32 %v1320, %v1426
      %v1478 = vadd.f32 %v1321, %v1429
      %v1479 = vadd.f32 %v1322, %v1432
      %v1480 = vadd.f32 %v1323, %v1435
      %v1481 = vadd.f32 %v1324, %v1438
      %v1482 = vadd.f32 %v1325, %v1441
      %v1483 = vadd.f32 %v1326, %v1444
      %v1484 = vadd.f32 %v1327, %v1447
      %v1485 = vadd.f32 %v1328, %v1450
      %v1486 = vadd.f32 %v1329, %v1453
      %v1488 = vsel %vm363, %v222, 0
      %v1491 = vsel %vm363, %v223, 0
      %v1494 = vsel %vm428, %v231, 0
      %1496 = vmatpush.msra.mxu0 0.0
      %1497 = vmatpush.msra.mxu0 0.0
      %1498 = vmatpush.msra.mxu0 0.0
      %1499 = vmatpush.msra.mxu0 0.0
      %1500 = vmatpush.msra.mxu0 0.0
      %1501 = vmatpush.msra.mxu0 0.0
      %1502 = vmatpush.msra.mxu0 0.0
      %1503 = vmatpush.msra.mxu0 0.0
      %1504 = vmatpush.msra.mxu0 0.0
      %1505 = vmatpush.msra.mxu0 0.0
      %1506 = vmatpush.msra.mxu0 0.0
      %1507 = vmatpush.msra.mxu0 0.0
      %1508 = vmatpush.msra.mxu0 0.0
      %1509 = vmatpush.msra.mxu0 0.0
      %1510 = vmatpush.msra.mxu0 0.0
      %1511 = vmatpush.msra.mxu0 %v1494
      %1512 = vmatmul.f32.gmra.mxu0 %v553
      %v1513 = vpop.f32.mrf.mxu0
      %v1514 = vadd.f32 0.0, %v1513
      %1515 = vmatmul.f32.gmra.mxu0 %v555
      %v1516 = vpop.f32.mrf.mxu0
      %v1517 = vadd.f32 0.0, %v1516
      %1518 = vmatmul.f32.gmra.mxu0 %v557
      %v1519 = vpop.f32.mrf.mxu0
      %v1520 = vadd.f32 0.0, %v1519
      %1521 = vmatmul.f32.gmra.mxu0 %v559
      %v1522 = vpop.f32.mrf.mxu0
      %v1523 = vadd.f32 0.0, %v1522
      %1524 = vmatmul.f32.gmra.mxu0 %v561
      %v1525 = vpop.f32.mrf.mxu0
      %v1526 = vadd.f32 0.0, %v1525
      %1527 = vmatmul.f32.gmra.mxu0 %v563
      %v1528 = vpop.f32.mrf.mxu0
      %v1529 = vadd.f32 0.0, %v1528
      %1530 = vmatmul.f32.gmra.mxu0 %v565
      %v1531 = vpop.f32.mrf.mxu0
      %v1532 = vadd.f32 0.0, %v1531
      %1533 = vmatmul.f32.gmra.mxu0 %v567
      %v1534 = vpop.f32.mrf.mxu0
      %v1535 = vadd.f32 0.0, %v1534
      %1536 = vmatmul.f32.gmra.mxu0 %v569
      %v1537 = vpop.f32.mrf.mxu0
      %v1538 = vadd.f32 0.0, %v1537
      %1539 = vmatmul.f32.gmra.mxu0 %v571
      %v1540 = vpop.f32.mrf.mxu0
      %v1541 = vadd.f32 0.0, %v1540
      %1542 = vmatmul.f32.gmra.mxu0 %v573
      %v1543 = vpop.f32.mrf.mxu0
      %v1544 = vadd.f32 0.0, %v1543
      %1545 = vmatmul.f32.gmra.mxu0 %v575
      %v1546 = vpop.f32.mrf.mxu0
      %v1547 = vadd.f32 0.0, %v1546
      %1548 = vmatmul.f32.gmra.mxu0 %v577
      %v1549 = vpop.f32.mrf.mxu0
      %v1550 = vadd.f32 0.0, %v1549
      %1551 = vmatmul.f32.gmra.mxu0 %v579
      %v1552 = vpop.f32.mrf.mxu0
      %v1553 = vadd.f32 0.0, %v1552
      %1554 = vmatmul.f32.gmra.mxu0 %v581
      %v1555 = vpop.f32.mrf.mxu0
      %v1556 = vadd.f32 0.0, %v1555
      %1557 = vmatmul.f32.gmra.mxu0 %v583
      %v1558 = vpop.f32.mrf.mxu0
      %v1559 = vadd.f32 0.0, %v1558
      %1560 = vmatmul.f32.gmra.mxu0 %v585
      %v1561 = vpop.f32.mrf.mxu0
      %v1562 = vadd.f32 0.0, %v1561
      %1563 = vmatmul.f32.gmra.mxu0 %v587
      %v1564 = vpop.f32.mrf.mxu0
      %v1565 = vadd.f32 0.0, %v1564
      %1566 = vmatmul.f32.gmra.mxu0 %v589
      %v1567 = vpop.f32.mrf.mxu0
      %v1568 = vadd.f32 0.0, %v1567
      %1569 = vmatmul.f32.gmra.mxu0 %v591
      %v1570 = vpop.f32.mrf.mxu0
      %v1571 = vadd.f32 0.0, %v1570
      %1572 = vmatmul.f32.gmra.mxu0 %v593
      %v1573 = vpop.f32.mrf.mxu0
      %v1574 = vadd.f32 0.0, %v1573
      %1575 = vmatmul.f32.gmra.mxu0 %v595
      %v1576 = vpop.f32.mrf.mxu0
      %v1577 = vadd.f32 0.0, %v1576
      %1578 = vmatmul.f32.gmra.mxu0 %v597
      %v1579 = vpop.f32.mrf.mxu0
      %v1580 = vadd.f32 0.0, %v1579
      %1581 = vmatmul.f32.gmra.mxu0 %v599
      %v1582 = vpop.f32.mrf.mxu0
      %v1583 = vadd.f32 0.0, %v1582
      %1584 = vmatmul.f32.gmra.mxu0 %v601
      %v1585 = vpop.f32.mrf.mxu0
      %v1586 = vadd.f32 0.0, %v1585
      %1587 = vmatmul.f32.gmra.mxu0 %v603
      %v1588 = vpop.f32.mrf.mxu0
      %v1589 = vadd.f32 0.0, %v1588
      %1590 = vmatmul.f32.gmra.mxu0 %v605
      %v1591 = vpop.f32.mrf.mxu0
      %v1592 = vadd.f32 0.0, %v1591
      %1593 = vmatmul.f32.gmra.mxu0 %v607
      %v1594 = vpop.f32.mrf.mxu0
      %v1595 = vadd.f32 0.0, %v1594
      %1596 = vmatmul.f32.gmra.mxu0 %v1019
      %v1597 = vpop.f32.mrf.mxu0
      %v1598 = vadd.f32 0.0, %v1597
      %1599 = vmatmul.f32.gmra.mxu0 %v1022
      %v1600 = vpop.f32.mrf.mxu0
      %v1601 = vadd.f32 0.0, %v1600
      %1602 = vmatmul.f32.gmra.mxu0 %v1488
      %v1603 = vpop.f32.mrf.mxu0
      %v1604 = vadd.f32 0.0, %v1603
      %1605 = vmatmul.f32.gmra.mxu0 %v1491
      %v1606 = vpop.f32.mrf.mxu0
      %v1607 = vadd.f32 0.0, %v1606
      %1608 = vdwg.mxu0
      %v1609 = vadd.f32 %v1455, %v1514
      %v1610 = vadd.f32 %v1456, %v1517
      %v1611 = vadd.f32 %v1457, %v1520
      %v1612 = vadd.f32 %v1458, %v1523
      %v1613 = vadd.f32 %v1459, %v1526
      %v1614 = vadd.f32 %v1460, %v1529
      %v1615 = vadd.f32 %v1461, %v1532
      %v1616 = vadd.f32 %v1462, %v1535
      %v1617 = vadd.f32 %v1463, %v1538
      %v1618 = vadd.f32 %v1464, %v1541
      %v1619 = vadd.f32 %v1465, %v1544
      %v1620 = vadd.f32 %v1466, %v1547
      %v1621 = vadd.f32 %v1467, %v1550
      %v1622 = vadd.f32 %v1468, %v1553
      %v1623 = vadd.f32 %v1469, %v1556
      %v1624 = vadd.f32 %v1470, %v1559
      %v1625 = vadd.f32 %v1471, %v1562
      %v1626 = vadd.f32 %v1472, %v1565
      %v1627 = vadd.f32 %v1473, %v1568
      %v1628 = vadd.f32 %v1474, %v1571
      %v1629 = vadd.f32 %v1475, %v1574
      %v1630 = vadd.f32 %v1476, %v1577
      %v1631 = vadd.f32 %v1477, %v1580
      %v1632 = vadd.f32 %v1478, %v1583
      %v1633 = vadd.f32 %v1479, %v1586
      %v1634 = vadd.f32 %v1480, %v1589
      %v1635 = vadd.f32 %v1481, %v1592
      %v1636 = vadd.f32 %v1482, %v1595
      %v1637 = vadd.f32 %v1483, %v1598
      %v1638 = vadd.f32 %v1484, %v1601
      %v1639 = vadd.f32 %v1485, %v1604
      %v1640 = vadd.f32 %v1486, %v1607
      %v1642 = vrot.slane %v222, 1
      %v1643 = vrot.slane %v223, 1
      %v1644 = vsel %vm282, %v1642, %v1643
      %v1645 = vrot.slane %v224, 1
      %v1646 = vsel %vm282, %v1643, %v1645
      %v1647 = vsel %vm363, %v1644, 0
      %v1649 = vsel %vm363, %v1646, 0
      %v1652 = vsel %vm428, %v232, 0
      %1654 = vmatpush.msra.mxu0 0.0
      %1655 = vmatpush.msra.mxu0 0.0
      %1656 = vmatpush.msra.mxu0 0.0
      %1657 = vmatpush.msra.mxu0 0.0
      %1658 = vmatpush.msra.mxu0 0.0
      %1659 = vmatpush.msra.mxu0 0.0
      %1660 = vmatpush.msra.mxu0 0.0
      %1661 = vmatpush.msra.mxu0 0.0
      %1662 = vmatpush.msra.mxu0 0.0
      %1663 = vmatpush.msra.mxu0 0.0
      %1664 = vmatpush.msra.mxu0 0.0
      %1665 = vmatpush.msra.mxu0 0.0
      %1666 = vmatpush.msra.mxu0 0.0
      %1667 = vmatpush.msra.mxu0 0.0
      %1668 = vmatpush.msra.mxu0 0.0
      %1669 = vmatpush.msra.mxu0 %v1652
      %1670 = vmatmul.f32.gmra.mxu0 %v372
      %v1671 = vpop.f32.mrf.mxu0
      %v1672 = vadd.f32 0.0, %v1671
      %1673 = vmatmul.f32.gmra.mxu0 %v374
      %v1674 = vpop.f32.mrf.mxu0
      %v1675 = vadd.f32 0.0, %v1674
      %1676 = vmatmul.f32.gmra.mxu0 %v376
      %v1677 = vpop.f32.mrf.mxu0
      %v1678 = vadd.f32 0.0, %v1677
      %1679 = vmatmul.f32.gmra.mxu0 %v378
      %v1680 = vpop.f32.mrf.mxu0
      %v1681 = vadd.f32 0.0, %v1680
      %1682 = vmatmul.f32.gmra.mxu0 %v380
      %v1683 = vpop.f32.mrf.mxu0
      %v1684 = vadd.f32 0.0, %v1683
      %1685 = vmatmul.f32.gmra.mxu0 %v382
      %v1686 = vpop.f32.mrf.mxu0
      %v1687 = vadd.f32 0.0, %v1686
      %1688 = vmatmul.f32.gmra.mxu0 %v384
      %v1689 = vpop.f32.mrf.mxu0
      %v1690 = vadd.f32 0.0, %v1689
      %1691 = vmatmul.f32.gmra.mxu0 %v386
      %v1692 = vpop.f32.mrf.mxu0
      %v1693 = vadd.f32 0.0, %v1692
      %1694 = vmatmul.f32.gmra.mxu0 %v388
      %v1695 = vpop.f32.mrf.mxu0
      %v1696 = vadd.f32 0.0, %v1695
      %1697 = vmatmul.f32.gmra.mxu0 %v390
      %v1698 = vpop.f32.mrf.mxu0
      %v1699 = vadd.f32 0.0, %v1698
      %1700 = vmatmul.f32.gmra.mxu0 %v392
      %v1701 = vpop.f32.mrf.mxu0
      %v1702 = vadd.f32 0.0, %v1701
      %1703 = vmatmul.f32.gmra.mxu0 %v394
      %v1704 = vpop.f32.mrf.mxu0
      %v1705 = vadd.f32 0.0, %v1704
      %1706 = vmatmul.f32.gmra.mxu0 %v396
      %v1707 = vpop.f32.mrf.mxu0
      %v1708 = vadd.f32 0.0, %v1707
      %1709 = vmatmul.f32.gmra.mxu0 %v398
      %v1710 = vpop.f32.mrf.mxu0
      %v1711 = vadd.f32 0.0, %v1710
      %1712 = vmatmul.f32.gmra.mxu0 %v400
      %v1713 = vpop.f32.mrf.mxu0
      %v1714 = vadd.f32 0.0, %v1713
      %1715 = vmatmul.f32.gmra.mxu0 %v402
      %v1716 = vpop.f32.mrf.mxu0
      %v1717 = vadd.f32 0.0, %v1716
      %1718 = vmatmul.f32.gmra.mxu0 %v404
      %v1719 = vpop.f32.mrf.mxu0
      %v1720 = vadd.f32 0.0, %v1719
      %1721 = vmatmul.f32.gmra.mxu0 %v406
      %v1722 = vpop.f32.mrf.mxu0
      %v1723 = vadd.f32 0.0, %v1722
      %1724 = vmatmul.f32.gmra.mxu0 %v408
      %v1725 = vpop.f32.mrf.mxu0
      %v1726 = vadd.f32 0.0, %v1725
      %1727 = vmatmul.f32.gmra.mxu0 %v410
      %v1728 = vpop.f32.mrf.mxu0
      %v1729 = vadd.f32 0.0, %v1728
      %1730 = vmatmul.f32.gmra.mxu0 %v412
      %v1731 = vpop.f32.mrf.mxu0
      %v1732 = vadd.f32 0.0, %v1731
      %1733 = vmatmul.f32.gmra.mxu0 %v414
      %v1734 = vpop.f32.mrf.mxu0
      %v1735 = vadd.f32 0.0, %v1734
      %1736 = vmatmul.f32.gmra.mxu0 %v416
      %v1737 = vpop.f32.mrf.mxu0
      %v1738 = vadd.f32 0.0, %v1737
      %1739 = vmatmul.f32.gmra.mxu0 %v418
      %v1740 = vpop.f32.mrf.mxu0
      %v1741 = vadd.f32 0.0, %v1740
      %1742 = vmatmul.f32.gmra.mxu0 %v420
      %v1743 = vpop.f32.mrf.mxu0
      %v1744 = vadd.f32 0.0, %v1743
      %1745 = vmatmul.f32.gmra.mxu0 %v422
      %v1746 = vpop.f32.mrf.mxu0
      %v1747 = vadd.f32 0.0, %v1746
      %1748 = vmatmul.f32.gmra.mxu0 %v424
      %v1749 = vpop.f32.mrf.mxu0
      %v1750 = vadd.f32 0.0, %v1749
      %1751 = vmatmul.f32.gmra.mxu0 %v426
      %v1752 = vpop.f32.mrf.mxu0
      %v1753 = vadd.f32 0.0, %v1752
      %1754 = vmatmul.f32.gmra.mxu0 %v1178
      %v1755 = vpop.f32.mrf.mxu0
      %v1756 = vadd.f32 0.0, %v1755
      %1757 = vmatmul.f32.gmra.mxu0 %v1180
      %v1758 = vpop.f32.mrf.mxu0
      %v1759 = vadd.f32 0.0, %v1758
      %1760 = vmatmul.f32.gmra.mxu0 %v1647
      %v1761 = vpop.f32.mrf.mxu0
      %v1762 = vadd.f32 0.0, %v1761
      %1763 = vmatmul.f32.gmra.mxu0 %v1649
      %v1764 = vpop.f32.mrf.mxu0
      %v1765 = vadd.f32 0.0, %v1764
      %1766 = vdwg.mxu0
      %v1767 = vadd.f32 %v1609, %v1672
      %v1768 = vadd.f32 %v1610, %v1675
      %v1769 = vadd.f32 %v1611, %v1678
      %v1770 = vadd.f32 %v1612, %v1681
      %v1771 = vadd.f32 %v1613, %v1684
      %v1772 = vadd.f32 %v1614, %v1687
      %v1773 = vadd.f32 %v1615, %v1690
      %v1774 = vadd.f32 %v1616, %v1693
      %v1775 = vadd.f32 %v1617, %v1696
      %v1776 = vadd.f32 %v1618, %v1699
      %v1777 = vadd.f32 %v1619, %v1702
      %v1778 = vadd.f32 %v1620, %v1705
      %v1779 = vadd.f32 %v1621, %v1708
      %v1780 = vadd.f32 %v1622, %v1711
      %v1781 = vadd.f32 %v1623, %v1714
      %v1782 = vadd.f32 %v1624, %v1717
      %v1783 = vadd.f32 %v1625, %v1720
      %v1784 = vadd.f32 %v1626, %v1723
      %v1785 = vadd.f32 %v1627, %v1726
      %v1786 = vadd.f32 %v1628, %v1729
      %v1787 = vadd.f32 %v1629, %v1732
      %v1788 = vadd.f32 %v1630, %v1735
      %v1789 = vadd.f32 %v1631, %v1738
      %v1790 = vadd.f32 %v1632, %v1741
      %v1791 = vadd.f32 %v1633, %v1744
      %v1792 = vadd.f32 %v1634, %v1747
      %v1793 = vadd.f32 %v1635, %v1750
      %v1794 = vadd.f32 %v1636, %v1753
      %v1795 = vadd.f32 %v1637, %v1756
      %v1796 = vadd.f32 %v1638, %v1759
      %v1797 = vadd.f32 %v1639, %v1762
      %v1798 = vadd.f32 %v1640, %v1765
      %v1799 = vrot.slane %v222, 2
      %v1800 = vrot.slane %v223, 2
      %v1801 = vsel %vm725, %v1799, %v1800
      %v1802 = vrot.slane %v224, 2
      %v1803 = vsel %vm725, %v1800, %v1802
      %v1804 = vsel %vm363, %v1801, 0
      %v1806 = vsel %vm363, %v1803, 0
      %v1809 = vsel %vm428, %v233, 0
      %1811 = vmatpush.msra.mxu0 0.0
      %1812 = vmatpush.msra.mxu0 0.0
      %1813 = vmatpush.msra.mxu0 0.0
      %1814 = vmatpush.msra.mxu0 0.0
      %1815 = vmatpush.msra.mxu0 0.0
      %1816 = vmatpush.msra.mxu0 0.0
      %1817 = vmatpush.msra.mxu0 0.0
      %1818 = vmatpush.msra.mxu0 0.0
      %1819 = vmatpush.msra.mxu0 0.0
      %1820 = vmatpush.msra.mxu0 0.0
      %1821 = vmatpush.msra.mxu0 0.0
      %1822 = vmatpush.msra.mxu0 0.0
      %1823 = vmatpush.msra.mxu0 0.0
      %1824 = vmatpush.msra.mxu0 0.0
      %1825 = vmatpush.msra.mxu0 0.0
      %1826 = vmatpush.msra.mxu0 %v1809
      %1827 = vmatmul.f32.gmra.mxu0 %v814
      %v1828 = vpop.f32.mrf.mxu0
      %v1829 = vadd.f32 0.0, %v1828
      %1830 = vmatmul.f32.gmra.mxu0 %v816
      %v1831 = vpop.f32.mrf.mxu0
      %v1832 = vadd.f32 0.0, %v1831
      %1833 = vmatmul.f32.gmra.mxu0 %v818
      %v1834 = vpop.f32.mrf.mxu0
      %v1835 = vadd.f32 0.0, %v1834
      %1836 = vmatmul.f32.gmra.mxu0 %v820
      %v1837 = vpop.f32.mrf.mxu0
      %v1838 = vadd.f32 0.0, %v1837
      %1839 = vmatmul.f32.gmra.mxu0 %v822
      %v1840 = vpop.f32.mrf.mxu0
      %v1841 = vadd.f32 0.0, %v1840
      %1842 = vmatmul.f32.gmra.mxu0 %v824
      %v1843 = vpop.f32.mrf.mxu0
      %v1844 = vadd.f32 0.0, %v1843
      %1845 = vmatmul.f32.gmra.mxu0 %v826
      %v1846 = vpop.f32.mrf.mxu0
      %v1847 = vadd.f32 0.0, %v1846
      %1848 = vmatmul.f32.gmra.mxu0 %v828
      %v1849 = vpop.f32.mrf.mxu0
      %v1850 = vadd.f32 0.0, %v1849
      %1851 = vmatmul.f32.gmra.mxu0 %v830
      %v1852 = vpop.f32.mrf.mxu0
      %v1853 = vadd.f32 0.0, %v1852
      %1854 = vmatmul.f32.gmra.mxu0 %v832
      %v1855 = vpop.f32.mrf.mxu0
      %v1856 = vadd.f32 0.0, %v1855
      %1857 = vmatmul.f32.gmra.mxu0 %v834
      %v1858 = vpop.f32.mrf.mxu0
      %v1859 = vadd.f32 0.0, %v1858
      %1860 = vmatmul.f32.gmra.mxu0 %v836
      %v1861 = vpop.f32.mrf.mxu0
      %v1862 = vadd.f32 0.0, %v1861
      %1863 = vmatmul.f32.gmra.mxu0 %v838
      %v1864 = vpop.f32.mrf.mxu0
      %v1865 = vadd.f32 0.0, %v1864
      %1866 = vmatmul.f32.gmra.mxu0 %v840
      %v1867 = vpop.f32.mrf.mxu0
      %v1868 = vadd.f32 0.0, %v1867
      %1869 = vmatmul.f32.gmra.mxu0 %v842
      %v1870 = vpop.f32.mrf.mxu0
      %v1871 = vadd.f32 0.0, %v1870
      %1872 = vmatmul.f32.gmra.mxu0 %v844
      %v1873 = vpop.f32.mrf.mxu0
      %v1874 = vadd.f32 0.0, %v1873
      %1875 = vmatmul.f32.gmra.mxu0 %v846
      %v1876 = vpop.f32.mrf.mxu0
      %v1877 = vadd.f32 0.0, %v1876
      %1878 = vmatmul.f32.gmra.mxu0 %v848
      %v1879 = vpop.f32.mrf.mxu0
      %v1880 = vadd.f32 0.0, %v1879
      %1881 = vmatmul.f32.gmra.mxu0 %v850
      %v1882 = vpop.f32.mrf.mxu0
      %v1883 = vadd.f32 0.0, %v1882
      %1884 = vmatmul.f32.gmra.mxu0 %v852
      %v1885 = vpop.f32.mrf.mxu0
      %v1886 = vadd.f32 0.0, %v1885
      %1887 = vmatmul.f32.gmra.mxu0 %v854
      %v1888 = vpop.f32.mrf.mxu0
      %v1889 = vadd.f32 0.0, %v1888
      %1890 = vmatmul.f32.gmra.mxu0 %v856
      %v1891 = vpop.f32.mrf.mxu0
      %v1892 = vadd.f32 0.0, %v1891
      %1893 = vmatmul.f32.gmra.mxu0 %v858
      %v1894 = vpop.f32.mrf.mxu0
      %v1895 = vadd.f32 0.0, %v1894
      %1896 = vmatmul.f32.gmra.mxu0 %v860
      %v1897 = vpop.f32.mrf.mxu0
      %v1898 = vadd.f32 0.0, %v1897
      %1899 = vmatmul.f32.gmra.mxu0 %v862
      %v1900 = vpop.f32.mrf.mxu0
      %v1901 = vadd.f32 0.0, %v1900
      %1902 = vmatmul.f32.gmra.mxu0 %v864
      %v1903 = vpop.f32.mrf.mxu0
      %v1904 = vadd.f32 0.0, %v1903
      %1905 = vmatmul.f32.gmra.mxu0 %v866
      %v1906 = vpop.f32.mrf.mxu0
      %v1907 = vadd.f32 0.0, %v1906
      %1908 = vmatmul.f32.gmra.mxu0 %v868
      %v1909 = vpop.f32.mrf.mxu0
      %v1910 = vadd.f32 0.0, %v1909
      %1911 = vmatmul.f32.gmra.mxu0 %v1335
      %v1912 = vpop.f32.mrf.mxu0
      %v1913 = vadd.f32 0.0, %v1912
      %1914 = vmatmul.f32.gmra.mxu0 %v1337
      %v1915 = vpop.f32.mrf.mxu0
      %v1916 = vadd.f32 0.0, %v1915
      %1917 = vmatmul.f32.gmra.mxu0 %v1804
      %v1918 = vpop.f32.mrf.mxu0
      %v1919 = vadd.f32 0.0, %v1918
      %1920 = vmatmul.f32.gmra.mxu0 %v1806
      %v1921 = vpop.f32.mrf.mxu0
      %v1922 = vadd.f32 0.0, %v1921
      %1923 = vdwg.mxu0
      %v1924 = vadd.f32 %v1767, %v1829
      %v1925 = vadd.f32 %v1768, %v1832
      %v1926 = vadd.f32 %v1769, %v1835
      %v1927 = vadd.f32 %v1770, %v1838
      %v1928 = vadd.f32 %v1771, %v1841
      %v1929 = vadd.f32 %v1772, %v1844
      %v1930 = vadd.f32 %v1773, %v1847
      %v1931 = vadd.f32 %v1774, %v1850
      %v1932 = vadd.f32 %v1775, %v1853
      %v1933 = vadd.f32 %v1776, %v1856
      %v1934 = vadd.f32 %v1777, %v1859
      %v1935 = vadd.f32 %v1778, %v1862
      %v1936 = vadd.f32 %v1779, %v1865
      %v1937 = vadd.f32 %v1780, %v1868
      %v1938 = vadd.f32 %v1781, %v1871
      %v1939 = vadd.f32 %v1782, %v1874
      %v1940 = vadd.f32 %v1783, %v1877
      %v1941 = vadd.f32 %v1784, %v1880
      %v1942 = vadd.f32 %v1785, %v1883
      %v1943 = vadd.f32 %v1786, %v1886
      %v1944 = vadd.f32 %v1787, %v1889
      %v1945 = vadd.f32 %v1788, %v1892
      %v1946 = vadd.f32 %v1789, %v1895
      %v1947 = vadd.f32 %v1790, %v1898
      %v1948 = vadd.f32 %v1791, %v1901
      %v1949 = vadd.f32 %v1792, %v1904
      %v1950 = vadd.f32 %v1793, %v1907
      %v1951 = vadd.f32 %v1794, %v1910
      %v1952 = vadd.f32 %v1795, %v1913
      %v1953 = vadd.f32 %v1796, %v1916
      %v1954 = vadd.f32 %v1797, %v1919
      %v1955 = vadd.f32 %v1798, %v1922
      %v1956 = vld [vmem:[%s2] sm:$0x1]
      %v1958 = vperm.slane %v1956, 0
      %v1960 = vadd.f32 %v1924, %v1958
      %v1961 = vadd.f32 %v1925, %v1958
      %v1962 = vadd.f32 %v1926, %v1958
      %v1963 = vadd.f32 %v1927, %v1958
      %v1964 = vadd.f32 %v1928, %v1958
      %v1965 = vadd.f32 %v1929, %v1958
      %v1966 = vadd.f32 %v1930, %v1958
      %v1967 = vadd.f32 %v1931, %v1958
      %v1968 = vadd.f32 %v1932, %v1958
      %v1969 = vadd.f32 %v1933, %v1958
      %v1970 = vadd.f32 %v1934, %v1958
      %v1971 = vadd.f32 %v1935, %v1958
      %v1972 = vadd.f32 %v1936, %v1958
      %v1973 = vadd.f32 %v1937, %v1958
      %v1974 = vadd.f32 %v1938, %v1958
      %v1975 = vadd.f32 %v1939, %v1958
      %v1976 = vadd.f32 %v1940, %v1958
      %v1977 = vadd.f32 %v1941, %v1958
      %v1978 = vadd.f32 %v1942, %v1958
      %v1979 = vadd.f32 %v1943, %v1958
      %v1980 = vadd.f32 %v1944, %v1958
      %v1981 = vadd.f32 %v1945, %v1958
      %v1982 = vadd.f32 %v1946, %v1958
      %v1983 = vadd.f32 %v1947, %v1958
      %v1984 = vadd.f32 %v1948, %v1958
      %v1985 = vadd.f32 %v1949, %v1958
      %v1986 = vadd.f32 %v1950, %v1958
      %v1987 = vadd.f32 %v1951, %v1958
      %v1988 = vadd.f32 %v1952, %v1958
      %v1989 = vadd.f32 %v1953, %v1958
      %v1990 = vadd.f32 %v1954, %v1958
      %v1991 = vadd.f32 %v1955, %v1958
      %1992 = vst [vmem:[%s170] sm:$0xff] %v1960
      %1993 = vst [vmem:[%s170 + $0x8] sm:$0xff] %v1961
      %1994 = vst [vmem:[%s170 + $0x10] sm:$0xff] %v1962
      %1995 = vst [vmem:[%s170 + $0x18] sm:$0xff] %v1963
      %1996 = vst [vmem:[%s170 + $0x20] sm:$0xff] %v1964
      %1997 = vst [vmem:[%s170 + $0x28] sm:$0xff] %v1965
      %1998 = vst [vmem:[%s170 + $0x30] sm:$0xff] %v1966
      %1999 = vst [vmem:[%s170 + $0x38] sm:$0xff] %v1967
      %2000 = vst [vmem:[%s170 + $0x40] sm:$0xff] %v1968
      %2001 = vst [vmem:[%s170 + $0x48] sm:$0xff] %v1969
      %2002 = vst [vmem:[%s170 + $0x50] sm:$0xff] %v1970
      %2003 = vst [vmem:[%s170 + $0x58] sm:$0xff] %v1971
      %2004 = vst [vmem:[%s170 + $0x60] sm:$0xff] %v1972
      %2005 = vst [vmem:[%s170 + $0x68] sm:$0xff] %v1973
      %2006 = vst [vmem:[%s170 + $0x70] sm:$0xff] %v1974
      %2007 = vst [vmem:[%s170 + $0x78] sm:$0xff] %v1975
      %2008 = vst [vmem:[%s170 + $0x80] sm:$0xff] %v1976
      %2009 = vst [vmem:[%s170 + $0x88] sm:$0xff] %v1977
      %2010 = vst [vmem:[%s170 + $0x90] sm:$0xff] %v1978
      %2011 = vst [vmem:[%s170 + $0x98] sm:$0xff] %v1979
      %2012 = vst [vmem:[%s170 + $0xa0] sm:$0xff] %v1980
      %2013 = vst [vmem:[%s170 + $0xa8] sm:$0xff] %v1981
      %2014 = vst [vmem:[%s170 + $0xb0] sm:$0xff] %v1982
      %2015 = vst [vmem:[%s170 + $0xb8] sm:$0xff] %v1983
      %2016 = vst [vmem:[%s170 + $0xc0] sm:$0xff] %v1984
      %2017 = vst [vmem:[%s170 + $0xc8] sm:$0xff] %v1985
      %2018 = vst [vmem:[%s170 + $0xd0] sm:$0xff] %v1986
      %2019 = vst [vmem:[%s170 + $0xd8] sm:$0xff] %v1987
      %2020 = vst [vmem:[%s170 + $0xe0] sm:$0xff] %v1988
      %2021 = vst [vmem:[%s170 + $0xe8] sm:$0xff] %v1989
      %2022 = vst [vmem:[%s170 + $0xf0] sm:$0xff] %v1990
      %2023 = vst [vmem:[%s170 + $0xf8] sm:$0xff] %v1991
      %p2024 = scmp.lt.s32.totalorder %s14, 1
      %s2025 = scalar_select %p2024, %s14, 1
      %s2026 = smul.addr %s2025, 32
      %s2027 = smul.addr %s2026, 8
      %s2028 = scalar_lea.vmem %s3, %s2027
      // Predicated region
      $region33: #{conv2d_decomp.1} parent=31 // pred_check
        %p2029 = pneg %p100
      $region34: #{conv2d_decomp.1} parent=31 // pred_check_branch
        %2031 = sbr.rel (%p2029) target = $region36
      $region35: #{conv2d_decomp.1} parent=31 // pred_region
        _
      $region36: #{conv2d_decomp.1} parent=31 // pred_fallthru
        _
    $region32: #{conv2d_decomp.1} parent=5 // pred_fallthru
      _
    %p2032 = scmp.le.s32.totalorder 2, %s9
    // Predicated region
    $region37: #{conv2d_decomp.1} parent=5 // pred_check
      %p2033 = pneg %p2032
    $region38: #{conv2d_decomp.1} parent=5 // pred_check_branch
      %2035 = sbr.rel (%p2033) target = $region40
    $region39: #{conv2d_decomp.1} parent=5 // pred_region
      %s2036 = ssub.s32 %s9, 2
      // Predicated region
      $region41: #{conv2d_decomp.1} parent=39 // pred_check
        %p2037 = pneg %p106
      $region42: #{conv2d_decomp.1} parent=39 // pred_check_branch
        %2039 = sbr.rel (%p2037) target = $region44
      $region43: #{conv2d_decomp.1} parent=39 // pred_region
        %p2040 = scmp.lt.s32.totalorder %s15, 1
        %s2041 = scalar_select %p2040, %s15, 1
        %s2042 = smul.addr %s2041, 32
        %s2043 = smul.addr %s2042, 8
        %s2044 = scalar_lea.vmem %s3, %s2043
      $region44: #{conv2d_decomp.1} parent=39 // pred_fallthru
        _
    $region40: #{conv2d_decomp.1} parent=5 // pred_fallthru
      _
  $region6: #{conv2d_decomp.1} parent=0 // loop_footer
    %s13 = sadd.s32 1, %s9
  $region7: #{conv2d_decomp.1} parent=0 // loop_footer_branch
    %8 = sbr.rel target = $region3
  $region8: #{conv2d_decomp.1} parent=0 // loop_exit
    _

</llo_original>
